<compile_context>
chip_gen: v5e
topology: v5e:2x2
jax: 0.10.0
libtpu: 0.0.40
codegen_flags: <defaults>
</compile_context>

<pallas_src>
import functools

import jax
import jax.numpy as jnp
import numpy as np
from jax.experimental import pallas as pl
from jax.experimental.pallas import tpu as pltpu

EPS = 1e-5
PAD_L = 8   # left halo width in the conv1 scratch; 8 keeps the interior store sublane-aligned


# ---------------------------------------------------------------------------
# Fused kernel: per batch element,
#   stage 1: 1x1 conv + bn1 + relu        (one MXU matmul over all pixels)
#   stage 2: 3x3 conv + bn2 + relu        (im2col -> single fat-K MXU matmul)
#   stage 3: 1x1 conv + bn3               (one MXU matmul)
# Intermediates stay in VMEM scratch / vregs; only x is read and out is written to HBM.
# ---------------------------------------------------------------------------
def _fused_bottleneck_kernel(x_ref, w1_ref, s1_ref, b1_ref,
                             w2_ref, s2_ref, b2_ref,
                             w3_ref, s3_ref, b3_ref,
                             o_ref, h1p_ref, *,
                             stride, H, W, Cin, C1, C3, Ho, Wo, row_tile):
    # ---------------- stage 1: 1x1 conv + bn1 + relu ----------------
    x = x_ref[0].reshape(H * W, Cin)
    h1 = jnp.dot(x, w1_ref[...], preferred_element_type=jnp.float32)
    h1 = jnp.maximum(h1 * s1_ref[...] + b1_ref[...], 0.0)

    # Keep conv1 output in VMEM with a zero halo for the 3x3 conv.
    # Rows [1, H] hold the image (rows 0 / H+1 are the top/bottom halo);
    # columns [PAD_L, PAD_L+W) hold the image (PAD_L-1 / PAD_L+W are the halo).
    h1p_ref[...] = jnp.zeros_like(h1p_ref)
    h1p_ref[1:H + 1, PAD_L:PAD_L + W, :] = h1.reshape(H, W, C1)

    # -------- stages 2+3, chunked over output rows --------
    for r0 in range(0, Ho, row_tile):
        tr = min(row_tile, Ho - r0)
        band_h = (tr - 1) * stride + 3
        band = h1p_ref[r0 * stride:r0 * stride + band_h, :, :]   # (band_h, Wp, C1)

        taps = []
        for kh in range(3):
            for kw in range(3):
                c0 = PAD_L - 1 + kw
                taps.append(jax.lax.slice(
                    band,
                    (kh, c0, 0),
                    (kh + (tr - 1) * stride + 1, c0 + (Wo - 1) * stride + 1, C1),
                    (stride, stride, 1)))                        # (tr, Wo, C1)
        # im2col patch: contraction dim K = 9*C1 in a single MXU matmul.
        patch = jnp.concatenate(taps, axis=-1).reshape(tr * Wo, 9 * C1)

        h2 = jnp.dot(patch, w2_ref[...], preferred_element_type=jnp.float32)
        h2 = jnp.maximum(h2 * s2_ref[...] + b2_ref[...], 0.0)

        y = jnp.dot(h2, w3_ref[...], preferred_element_type=jnp.float32)
        y = y * s3_ref[...] + b3_ref[...]
        o_ref[0, r0:r0 + tr] = y.reshape(tr, Wo, C3).astype(o_ref.dtype)


def bottleneck_forward(x_nchw, p, *, stride=1):
    x = jnp.transpose(x_nchw, (0, 2, 3, 1)).astype(jnp.float32)   # NCHW -> NHWC
    N, H, W, Cin = x.shape
    C1 = p["w1"].shape[1]
    C3 = p["w3"].shape[1]
    Ho = (H + 2 - 3) // stride + 1
    Wo = (W + 2 - 3) // stride + 1
    Wp = PAD_L + W + 1          # padded scratch width (left halo aligned to 8 sublanes)

    # Chunk stages 2+3 over output rows so each im2col patch is ~<= 1024 MXU rows.
    row_tile = max(1, min(Ho, 1024 // max(Wo, 1)))

    kern = functools.partial(
        _fused_bottleneck_kernel, stride=stride, H=H, W=W,
        Cin=Cin, C1=C1, C3=C3, Ho=Ho, Wo=Wo, row_tile=row_tile)

    const2 = lambda b: (0, 0)   # weights / folded-BN params: same block every step
    out = pl.pallas_call(
        kern,
        out_shape=jax.ShapeDtypeStruct((N, Ho, Wo, C3), jnp.float32),
        grid=(N,),
        in_specs=[
            pl.BlockSpec((1, H, W, Cin), lambda b: (b, 0, 0, 0)),
            pl.BlockSpec((Cin, C1), const2),
            pl.BlockSpec((1, C1), const2),
            pl.BlockSpec((1, C1), const2),
            pl.BlockSpec((9 * C1, C1), const2),
            pl.BlockSpec((1, C1), const2),
            pl.BlockSpec((1, C1), const2),
            pl.BlockSpec((C1, C3), const2),
            pl.BlockSpec((1, C3), const2),
            pl.BlockSpec((1, C3), const2),
        ],
        out_specs=pl.BlockSpec((1, Ho, Wo, C3), lambda b: (b, 0, 0, 0)),
        scratch_shapes=[pltpu.VMEM((H + 2, Wp, C1), jnp.float32)],
        compiler_params=pltpu.CompilerParams(
            dimension_semantics=("parallel",),
            vmem_limit_bytes=32 * 1024 * 1024),
    )(x, p["w1"], p["s1"], p["b1"], p["w2"], p["s2"], p["b2"],
      p["w3"], p["s3"], p["b3"])
    return jnp.transpose(out, (0, 3, 1, 2))   # NHWC -> NCHW


# ---------------------------------------------------------------------------
# Parameter construction (deterministic, synthetic) + BN folding
# ---------------------------------------------------------------------------
def make_params(key, inplanes, planes, expansion=4):
    ks = jax.random.split(key, 15)
    outp = planes * expansion

    def conv_w(k, cout, cin, kh, kw):
        fan = cin * kh * kw
        return (jax.random.normal(k, (cout, cin, kh, kw), jnp.float32)
                * (2.0 / fan) ** 0.5)

    def bn_p(k0, k1, k2, k3, c):
        gamma = 0.5 + jax.random.uniform(k0, (c,), jnp.float32)
        beta = 0.1 * jax.random.normal(k1, (c,), jnp.float32)
        mean = 0.1 * jax.random.normal(k2, (c,), jnp.float32)
        var = 0.5 + jax.random.uniform(k3, (c,), jnp.float32)
        return gamma, beta, mean, var

    raw = {
        "conv1": conv_w(ks[0], planes, inplanes, 1, 1),
        "conv2": conv_w(ks[1], planes, planes, 3, 3),
        "conv3": conv_w(ks[2], outp, planes, 1, 1),
        "bn1": bn_p(ks[3], ks[4], ks[5], ks[6], planes),
        "bn2": bn_p(ks[7], ks[8], ks[9], ks[10], planes),
        "bn3": bn_p(ks[11], ks[12], ks[13], ks[14], outp),
    }

    def fold(bn):
        g, b, m, v = bn
        s = g / jnp.sqrt(v + EPS)
        return s, b - m * s

    s1, b1 = fold(raw["bn1"])
    s2, b2 = fold(raw["bn2"])
    s3, b3 = fold(raw["bn3"])
    kernel_params = {
        # 1x1 convs as (Cin, Cout) matmul weights
        "w1": jnp.transpose(raw["conv1"][:, :, 0, 0], (1, 0)),
        # 3x3 conv as im2col weights: row (kh*3+kw)*Cin + cin  ->  (9*Cin, Cout)
        "w2": jnp.transpose(raw["conv2"], (2, 3, 1, 0)).reshape(9 * planes, planes),
        "w3": jnp.transpose(raw["conv3"][:, :, 0, 0], (1, 0)),
        "s1": s1.reshape(1, -1), "b1": b1.reshape(1, -1),
        "s2": s2.reshape(1, -1), "b2": b2.reshape(1, -1),
        "s3": s3.reshape(1, -1), "b3": b3.reshape(1, -1),
    }
    return raw, kernel_params


# ---------------------------------------------------------------------------
# Pure-JAX reference (lax.conv) for verification
# ---------------------------------------------------------------------------
def ref_forward(x_nchw, raw, *, stride=1):
    def conv(x, w, s, pad):
        return jax.lax.conv_general_dilated(
            x, w, (s, s), pad, dimension_numbers=("NCHW", "OIHW", "NCHW"))

    def bn(x, params):
        g, b, m, v = params
        sc = g / jnp.sqrt(v + EPS)
        return x * sc[None, :, None, None] + (b - m * sc)[None, :, None, None]

    h = jax.nn.relu(bn(conv(x_nchw, raw["conv1"], 1, "VALID"), raw["bn1"]))
    h = jax.nn.relu(bn(conv(h, raw["conv2"], stride, [(1, 1), (1, 1)]), raw["bn2"]))
    return bn(conv(h, raw["conv3"], 1, "VALID"), raw["bn3"])


if __name__ == "__main__":
    key = jax.random.PRNGKey(0)
    k_x, k_p = jax.random.split(key)

    # Small shapes consistent with the module: Bottleneck(inplanes=8, planes=4, stride=1)
    N, inplanes, H, W = 2, 8, 16, 16
    planes, stride = 4, 1

    x = jax.random.normal(k_x, (N, inplanes, H, W), jnp.float32)
    raw_params, kernel_params = make_params(k_p, inplanes, planes)

    out = bottleneck_forward(x, kernel_params, stride=stride)
    out = jax.block_until_ready(out)

    ref = jax.block_until_ready(ref_forward(x, raw_params, stride=stride))
    np.testing.assert_allclose(np.asarray(out), np.asarray(ref), rtol=1e-4, atol=5e-4)

    # TODO(synk): for very large images, grid additionally over output-row tiles with a
    # manually-DMA'd halo so a single batch element's conv1 scratch never exceeds VMEM.
    print("KERNEL_OK")
</pallas_src>

<mosaic_0001>
module attributes {stable_mosaic.version = 11 : i64} {
  func.func @_fused_bottleneck_kernel(%arg0: i32, %arg1: memref<1x16x16x8xf32, #tpu.memory_space<vmem>>, %arg2: memref<8x4xf32, #tpu.memory_space<vmem>>, %arg3: memref<1x4xf32, #tpu.memory_space<vmem>>, %arg4: memref<1x4xf32, #tpu.memory_space<vmem>>, %arg5: memref<36x4xf32, #tpu.memory_space<vmem>>, %arg6: memref<1x4xf32, #tpu.memory_space<vmem>>, %arg7: memref<1x4xf32, #tpu.memory_space<vmem>>, %arg8: memref<4x16xf32, #tpu.memory_space<vmem>>, %arg9: memref<1x16xf32, #tpu.memory_space<vmem>>, %arg10: memref<1x16xf32, #tpu.memory_space<vmem>>, %arg11: memref<1x16x16x16xf32, #tpu.memory_space<vmem>>, %arg12: memref<18x25x4xf32, #tpu.memory_space<vmem>>) attributes {dimension_semantics = [#tpu.dimension_semantics<parallel>], iteration_bounds = array<i64: 2>, scalar_prefetch = 0 : i64, scratch_operands = 1 : i64, tpu.core_type = #tpu.core_type<tc>, window_params = [{transform_indices = @transform_0, window_bounds = array<i64: 1, 16, 16, 8>}, {pipeline_mode = #tpu.pipeline_mode<synchronous>, transform_indices = @transform_1, window_bounds = array<i64: 8, 4>}, {pipeline_mode = #tpu.pipeline_mode<synchronous>, transform_indices = @transform_2, window_bounds = array<i64: 1, 4>}, {pipeline_mode = #tpu.pipeline_mode<synchronous>, transform_indices = @transform_3, window_bounds = array<i64: 1, 4>}, {pipeline_mode = #tpu.pipeline_mode<synchronous>, transform_indices = @transform_4, window_bounds = array<i64: 36, 4>}, {pipeline_mode = #tpu.pipeline_mode<synchronous>, transform_indices = @transform_5, window_bounds = array<i64: 1, 4>}, {pipeline_mode = #tpu.pipeline_mode<synchronous>, transform_indices = @transform_6, window_bounds = array<i64: 1, 4>}, {pipeline_mode = #tpu.pipeline_mode<synchronous>, transform_indices = @transform_7, window_bounds = array<i64: 4, 16>}, {pipeline_mode = #tpu.pipeline_mode<synchronous>, transform_indices = @transform_8, window_bounds = array<i64: 1, 16>}, {pipeline_mode = #tpu.pipeline_mode<synchronous>, transform_indices = @transform_9, window_bounds = array<i64: 1, 16>}, {transform_indices = @transform_10, window_bounds = array<i64: 1, 16, 16, 16>}]} {
    %c0 = arith.constant 0 : index
    %c0_0 = arith.constant 0 : index
    %c0_1 = arith.constant 0 : index
    %c0_2 = arith.constant 0 : index
    %0 = vector.load %arg1[%c0, %c0_0, %c0_1, %c0_2] : memref<1x16x16x8xf32, #tpu.memory_space<vmem>>, vector<1x16x16x8xf32>
    %1 = vector.shape_cast %0 : vector<1x16x16x8xf32> to vector<16x16x8xf32>
    %2 = vector.shape_cast %1 : vector<16x16x8xf32> to vector<256x8xf32>
    %c0_3 = arith.constant 0 : index
    %c0_4 = arith.constant 0 : index
    %3 = vector.load %arg2[%c0_3, %c0_4] : memref<8x4xf32, #tpu.memory_space<vmem>>, vector<8x4xf32>
    %cst = arith.constant dense<0.000000e+00> : vector<256x4xf32>
    %4 = tpu.matmul %2, %3, %cst {dimension_numbers = #tpu.dot_dimension_numbers<[1], [0], [0], [1], [0, 0, 1, 1], [], []>} : vector<256x8xf32>, vector<8x4xf32>, vector<256x4xf32> -> vector<256x4xf32>
    %c0_5 = arith.constant 0 : index
    %c0_6 = arith.constant 0 : index
    %5 = vector.load %arg3[%c0_5, %c0_6] : memref<1x4xf32, #tpu.memory_space<vmem>>, vector<1x4xf32>
    %6 = vector.broadcast %5 : vector<1x4xf32> to vector<256x4xf32>
    %7 = arith.mulf %4, %6 : vector<256x4xf32>
    %c0_7 = arith.constant 0 : index
    %c0_8 = arith.constant 0 : index
    %8 = vector.load %arg4[%c0_7, %c0_8] : memref<1x4xf32, #tpu.memory_space<vmem>>, vector<1x4xf32>
    %9 = vector.broadcast %8 : vector<1x4xf32> to vector<256x4xf32>
    %10 = arith.addf %7, %9 : vector<256x4xf32>
    %cst_9 = arith.constant 0.000000e+00 : f32
    %11 = vector.broadcast %cst_9 : f32 to vector<256x4xf32>
    %12 = arith.maximumf %10, %11 : vector<256x4xf32>
    %cst_10 = arith.constant 0.000000e+00 : f32
    %13 = vector.broadcast %cst_10 : f32 to vector<18x25x4xf32>
    %c0_11 = arith.constant 0 : index
    %c0_12 = arith.constant 0 : index
    %c0_13 = arith.constant 0 : index
    %14 = vector.load %arg12[%c0_11, %c0_12, %c0_13] : memref<18x25x4xf32, #tpu.memory_space<vmem>>, vector<18x25x4xf32>
    tpu.vector_store %arg12[%c0_11, %c0_12, %c0_13], %13 {strides = array<i32>} : memref<18x25x4xf32, #tpu.memory_space<vmem>>, vector<18x25x4xf32>,
    %15 = vector.shape_cast %12 : vector<256x4xf32> to vector<16x16x4xf32>
    %c1 = arith.constant 1 : index
    %c8 = arith.constant 8 : index
    %c0_14 = arith.constant 0 : index
    %16 = vector.load %arg12[%c1, %c8, %c0_14] : memref<18x25x4xf32, #tpu.memory_space<vmem>>, vector<16x16x4xf32>
    tpu.vector_store %arg12[%c1, %c8, %c0_14], %15 {strides = array<i32>} : memref<18x25x4xf32, #tpu.memory_space<vmem>>, vector<16x16x4xf32>,
    %c0_15 = arith.constant 0 : index
    %c0_16 = arith.constant 0 : index
    %c0_17 = arith.constant 0 : index
    %17 = vector.load %arg12[%c0_15, %c0_16, %c0_17] : memref<18x25x4xf32, #tpu.memory_space<vmem>>, vector<18x25x4xf32>
    %18 = vector.extract_strided_slice %17 {offsets = [0, 7, 0], sizes = [16, 16, 4], strides = [1, 1, 1]} : vector<18x25x4xf32> to vector<16x16x4xf32>
    %19 = vector.extract_strided_slice %17 {offsets = [0, 8, 0], sizes = [16, 16, 4], strides = [1, 1, 1]} : vector<18x25x4xf32> to vector<16x16x4xf32>
    %20 = vector.extract_strided_slice %17 {offsets = [0, 9, 0], sizes = [16, 16, 4], strides = [1, 1, 1]} : vector<18x25x4xf32> to vector<16x16x4xf32>
    %21 = vector.extract_strided_slice %17 {offsets = [1, 7, 0], sizes = [16, 16, 4], strides = [1, 1, 1]} : vector<18x25x4xf32> to vector<16x16x4xf32>
    %22 = vector.extract_strided_slice %17 {offsets = [1, 8, 0], sizes = [16, 16, 4], strides = [1, 1, 1]} : vector<18x25x4xf32> to vector<16x16x4xf32>
    %23 = vector.extract_strided_slice %17 {offsets = [1, 9, 0], sizes = [16, 16, 4], strides = [1, 1, 1]} : vector<18x25x4xf32> to vector<16x16x4xf32>
    %24 = vector.extract_strided_slice %17 {offsets = [2, 7, 0], sizes = [16, 16, 4], strides = [1, 1, 1]} : vector<18x25x4xf32> to vector<16x16x4xf32>
    %25 = vector.extract_strided_slice %17 {offsets = [2, 8, 0], sizes = [16, 16, 4], strides = [1, 1, 1]} : vector<18x25x4xf32> to vector<16x16x4xf32>
    %26 = vector.extract_strided_slice %17 {offsets = [2, 9, 0], sizes = [16, 16, 4], strides = [1, 1, 1]} : vector<18x25x4xf32> to vector<16x16x4xf32>
    %27 = tpu.concatenate %18, %19, %20, %21, %22, %23, %24, %25, %26 in 2 : vector<16x16x4xf32>, vector<16x16x4xf32>, vector<16x16x4xf32>, vector<16x16x4xf32>, vector<16x16x4xf32>, vector<16x16x4xf32>, vector<16x16x4xf32>, vector<16x16x4xf32>, vector<16x16x4xf32> -> vector<16x16x36xf32>
    %28 = vector.shape_cast %27 : vector<16x16x36xf32> to vector<256x36xf32>
    %c0_18 = arith.constant 0 : index
    %c0_19 = arith.constant 0 : index
    %29 = vector.load %arg5[%c0_18, %c0_19] : memref<36x4xf32, #tpu.memory_space<vmem>>, vector<36x4xf32>
    %cst_20 = arith.constant dense<0.000000e+00> : vector<256x4xf32>
    %30 = tpu.matmul %28, %29, %cst_20 {dimension_numbers = #tpu.dot_dimension_numbers<[1], [0], [0], [1], [0, 0, 1, 1], [], []>} : vector<256x36xf32>, vector<36x4xf32>, vector<256x4xf32> -> vector<256x4xf32>
    %c0_21 = arith.constant 0 : index
    %c0_22 = arith.constant 0 : index
    %31 = vector.load %arg6[%c0_21, %c0_22] : memref<1x4xf32, #tpu.memory_space<vmem>>, vector<1x4xf32>
    %32 = vector.broadcast %31 : vector<1x4xf32> to vector<256x4xf32>
    %33 = arith.mulf %30, %32 : vector<256x4xf32>
    %c0_23 = arith.constant 0 : index
    %c0_24 = arith.constant 0 : index
    %34 = vector.load %arg7[%c0_23, %c0_24] : memref<1x4xf32, #tpu.memory_space<vmem>>, vector<1x4xf32>
    %35 = vector.broadcast %34 : vector<1x4xf32> to vector<256x4xf32>
    %36 = arith.addf %33, %35 : vector<256x4xf32>
    %cst_25 = arith.constant 0.000000e+00 : f32
    %37 = vector.broadcast %cst_25 : f32 to vector<256x4xf32>
    %38 = arith.maximumf %36, %37 : vector<256x4xf32>
    %c0_26 = arith.constant 0 : index
    %c0_27 = arith.constant 0 : index
    %39 = vector.load %arg8[%c0_26, %c0_27] : memref<4x16xf32, #tpu.memory_space<vmem>>, vector<4x16xf32>
    %cst_28 = arith.constant dense<0.000000e+00> : vector<256x16xf32>
    %40 = tpu.matmul %38, %39, %cst_28 {dimension_numbers = #tpu.dot_dimension_numbers<[1], [0], [0], [1], [0, 0, 1, 1], [], []>} : vector<256x4xf32>, vector<4x16xf32>, vector<256x16xf32> -> vector<256x16xf32>
    %c0_29 = arith.constant 0 : index
    %c0_30 = arith.constant 0 : index
    %41 = vector.load %arg9[%c0_29, %c0_30] : memref<1x16xf32, #tpu.memory_space<vmem>>, vector<1x16xf32>
    %42 = vector.broadcast %41 : vector<1x16xf32> to vector<256x16xf32>
    %43 = arith.mulf %40, %42 : vector<256x16xf32>
    %c0_31 = arith.constant 0 : index
    %c0_32 = arith.constant 0 : index
    %44 = vector.load %arg10[%c0_31, %c0_32] : memref<1x16xf32, #tpu.memory_space<vmem>>, vector<1x16xf32>
    %45 = vector.broadcast %44 : vector<1x16xf32> to vector<256x16xf32>
    %46 = arith.addf %43, %45 : vector<256x16xf32>
    %47 = vector.shape_cast %46 : vector<256x16xf32> to vector<16x16x16xf32>
    %c0_33 = arith.constant 0 : index
    %c0_34 = arith.constant 0 : index
    %c0_35 = arith.constant 0 : index
    %c0_36 = arith.constant 0 : index
    %48 = vector.load %arg11[%c0_33, %c0_34, %c0_35, %c0_36] : memref<1x16x16x16xf32, #tpu.memory_space<vmem>>, vector<1x16x16x16xf32>
    %49 = vector.shape_cast %48 : vector<1x16x16x16xf32> to vector<16x16x16xf32>
    %50 = vector.shape_cast %47 : vector<16x16x16xf32> to vector<1x16x16x16xf32>
    tpu.vector_store %arg11[%c0_33, %c0_34, %c0_35, %c0_36], %50 {strides = array<i32>} : memref<1x16x16x16xf32, #tpu.memory_space<vmem>>, vector<1x16x16x16xf32>,
    return
  }
  func.func @transform_0(%arg0: i32) -> (i32, i32, i32, i32) {
    %c0_i32 = arith.constant 0 : i32
    %c0_i32_0 = arith.constant 0 : i32
    %c0_i32_1 = arith.constant 0 : i32
    %c0_i32_2 = arith.constant 0 : i32
    return %arg0, %c0_i32, %c0_i32_0, %c0_i32_1 : i32, i32, i32, i32
  }
  func.func @transform_1(%arg0: i32) -> (i32, i32) {
    %c0_i32 = arith.constant 0 : i32
    %c0_i32_0 = arith.constant 0 : i32
    %c0_i32_1 = arith.constant 0 : i32
    return %c0_i32, %c0_i32_0 : i32, i32
  }
  func.func @transform_2(%arg0: i32) -> (i32, i32) {
    %c0_i32 = arith.constant 0 : i32
    %c0_i32_0 = arith.constant 0 : i32
    %c0_i32_1 = arith.constant 0 : i32
    return %c0_i32, %c0_i32_0 : i32, i32
  }
  func.func @transform_3(%arg0: i32) -> (i32, i32) {
    %c0_i32 = arith.constant 0 : i32
    %c0_i32_0 = arith.constant 0 : i32
    %c0_i32_1 = arith.constant 0 : i32
    return %c0_i32, %c0_i32_0 : i32, i32
  }
  func.func @transform_4(%arg0: i32) -> (i32, i32) {
    %c0_i32 = arith.constant 0 : i32
    %c0_i32_0 = arith.constant 0 : i32
    %c0_i32_1 = arith.constant 0 : i32
    return %c0_i32, %c0_i32_0 : i32, i32
  }
  func.func @transform_5(%arg0: i32) -> (i32, i32) {
    %c0_i32 = arith.constant 0 : i32
    %c0_i32_0 = arith.constant 0 : i32
    %c0_i32_1 = arith.constant 0 : i32
    return %c0_i32, %c0_i32_0 : i32, i32
  }
  func.func @transform_6(%arg0: i32) -> (i32, i32) {
    %c0_i32 = arith.constant 0 : i32
    %c0_i32_0 = arith.constant 0 : i32
    %c0_i32_1 = arith.constant 0 : i32
    return %c0_i32, %c0_i32_0 : i32, i32
  }
  func.func @transform_7(%arg0: i32) -> (i32, i32) {
    %c0_i32 = arith.constant 0 : i32
    %c0_i32_0 = arith.constant 0 : i32
    %c0_i32_1 = arith.constant 0 : i32
    return %c0_i32, %c0_i32_0 : i32, i32
  }
  func.func @transform_8(%arg0: i32) -> (i32, i32) {
    %c0_i32 = arith.constant 0 : i32
    %c0_i32_0 = arith.constant 0 : i32
    %c0_i32_1 = arith.constant 0 : i32
    return %c0_i32, %c0_i32_0 : i32, i32
  }
  func.func @transform_9(%arg0: i32) -> (i32, i32) {
    %c0_i32 = arith.constant 0 : i32
    %c0_i32_0 = arith.constant 0 : i32
    %c0_i32_1 = arith.constant 0 : i32
    return %c0_i32, %c0_i32_0 : i32, i32
  }
  func.func @transform_10(%arg0: i32) -> (i32, i32, i32, i32) {
    %c0_i32 = arith.constant 0 : i32
    %c0_i32_0 = arith.constant 0 : i32
    %c0_i32_1 = arith.constant 0 : i32
    %c0_i32_2 = arith.constant 0 : i32
    return %arg0, %c0_i32, %c0_i32_0, %c0_i32_1 : i32, i32, i32, i32
  }
}

</mosaic_0001>

<llo_original>
// kernel: tpu_custom_call.1
$region0: #{tpu_custom_call.1}
  #allocation0 [shape = 'u32[]', space=smem, size = 0x4, offset = 0x4, fixed_abs, tag = 'smem constant byte address 0x4 - core index']
  #allocation1 [shape = 'u32[72,128]{1,0:T(1,128)}', space=vmem, size = 0x9000, scoped, tag = 'internal scratch']
  #allocation2 [shape = 'f32[18,25,4]{2,1,0:T(8,128)}', space=vmem, size = 0x48000, scoped, tag = 'scratch operand']
  %s0 = inlined_call_operand.vmem [shape: f32[2,16,16,8], index: 0, kind: input, shape index: {}]
  %s1 = inlined_call_operand.vmem [shape: f32[8,4], index: 1, kind: input, shape index: {}]
  %s2 = inlined_call_operand.vmem [shape: f32[1,4], index: 2, kind: input, shape index: {}]
  %s3 = inlined_call_operand.vmem [shape: f32[1,4], index: 3, kind: input, shape index: {}]
  %s4 = inlined_call_operand.vmem [shape: f32[36,4], index: 4, kind: input, shape index: {}]
  %s5 = inlined_call_operand.vmem [shape: f32[1,4], index: 5, kind: input, shape index: {}]
  %s6 = inlined_call_operand.vmem [shape: f32[1,4], index: 6, kind: input, shape index: {}]
  %s7 = inlined_call_operand.vmem [shape: f32[4,16], index: 7, kind: input, shape index: {}]
  %s8 = inlined_call_operand.vmem [shape: f32[1,16], index: 8, kind: input, shape index: {}]
  %s9 = inlined_call_operand.vmem [shape: f32[1,16], index: 9, kind: input, shape index: {}]
  %s10 = inlined_call_operand.hbm [shape: f32[2,16,16,16], index: 10, kind: output, shape index: {}]
  %s11 = sld [smem:[#allocation0]]
  $region73: #{tpu_custom_call.1} parent=0
    _
  %s13 = ssub.s32 1, %s11
  %s14 = scalar_select 0, %s13, %s11
  $region1: #{tpu_custom_call.1} parent=0
    #allocation3 [shape = 'u8[262144]{0}', space=vmem, size = 0x40000, scoped, tag = 'output window, operand 0']
    #allocation4 [shape = 's32[2]{0}', space=sflag, size = 0x8, scoped, tag = 'scoped memory for tpu_custom_call.1']
    %15 = vsyncpa [#allocation4], 0
    %s16 = scalar_lea.sflag [#allocation4], 1
    %17 = vsyncpa %s16, 0
    loop: start=0, step=1, limit=4
    $region2: #{tpu_custom_call.1} parent=1 // loop_pre_header
      _
    $region3: #{tpu_custom_call.1} parent=1 // loop_header
      %s19 = sphi 0, %s23
      %p20 = scmp.ge.s32.totalorder %s19, 4
      %s29 = sphi 0, %s31
      %s32 = sphi 0, %s29
      %s33 = sphi 0, %s32
      %s49 = sphi 0, %s33
      %s53 = sphi 0, %s53
      %s55 = sphi 0, %s53
      %s56 = sphi 0, %s55
      %s70 = sphi 0, %s56
      %s74 = sphi 0, %s74
      %s76 = sphi 0, %s74
      %s77 = sphi 0, %s76
      %s91 = sphi 0, %s77
      %s95 = sphi 0, %s95
      %s97 = sphi 0, %s95
      %s98 = sphi 0, %s97
      %s112 = sphi 0, %s98
      %s116 = sphi 0, %s116
      %s118 = sphi 0, %s116
      %s119 = sphi 0, %s118
      %s133 = sphi 0, %s119
      %s137 = sphi 0, %s137
      %s139 = sphi 0, %s137
      %s140 = sphi 0, %s139
      %s154 = sphi 0, %s140
      %s158 = sphi 0, %s158
      %s160 = sphi 0, %s158
      %s161 = sphi 0, %s160
      %s175 = sphi 0, %s161
      %s179 = sphi 0, %s179
      %s181 = sphi 0, %s179
      %s182 = sphi 0, %s181
      %s196 = sphi 0, %s182
      %s200 = sphi 0, %s200
      %s202 = sphi 0, %s200
      %s203 = sphi 0, %s202
      %s217 = sphi 0, %s203
      %s221 = sphi 0, %s221
      %s223 = sphi 0, %s221
      %s224 = sphi 0, %s223
      %s238 = sphi 0, %s224
      %s244 = sphi 0, %s246
      %s247 = sphi 0, %s244
      %s248 = sphi 0, %s247
      %s264 = sphi 0, %s248
    $region4: #{tpu_custom_call.1} parent=1 // loop_header_branch
      %22 = sbr.rel (%p20) target = $region8
    $region5: #{tpu_custom_call.1} parent=1 // loop_body
      %s24 = ssub.s32 %s19, 1
      %s25 = ssub.s32 %s19, 2
      %s26 = sadd.s32 %s19, 1
      %s27 = ssub.s32 %s19, %s26
      %p28 = scmp.eq.s32.totalorder %s27, 0
      %s30 = sadd.s32 %s29, 1
      %s31 = scalar_select %p28, %s29, %s30
      %p34 = pneg %p28
      %p35 = scmp.eq.s32.totalorder %s19, 1
      %p36 = por %p34, %p35
      %p37 = scmp.ne.s32.totalorder %s29, %s32
      %p38 = scmp.eq.s32.totalorder %s19, 0
      %p39 = por %p37, %p38
      %p40 = scmp.ne.s32.totalorder %s29, %s32
      %p41 = scmp.eq.s32.totalorder %s24, 1
      %p42 = por %p40, %p41
      %p43 = scmp.ne.s32.totalorder %s32, %s33
      %p44 = scmp.eq.s32.totalorder %s24, 0
      %p45 = por %p43, %p44
      %p46 = scmp.ne.s32.totalorder %s32, %s33
      %p47 = scmp.eq.s32.totalorder %s25, 1
      %p48 = por %p46, %p47
      %p50 = scmp.ne.s32.totalorder %s33, %s49
      %p51 = scmp.eq.s32.totalorder %s25, 0
      %p52 = por %p50, %p51
      %s54 = sadd.s32 %s53, 1
      %p57 = scmp.eq.s32.totalorder %s19, 1
      %p58 = scmp.ne.s32.totalorder %s53, %s55
      %p59 = scmp.eq.s32.totalorder %s19, 0
      %p60 = por %p58, %p59
      %p61 = scmp.ne.s32.totalorder %s53, %s55
      %p62 = scmp.eq.s32.totalorder %s24, 1
      %p63 = por %p61, %p62
      %p64 = scmp.ne.s32.totalorder %s55, %s56
      %p65 = scmp.eq.s32.totalorder %s24, 0
      %p66 = por %p64, %p65
      %p67 = scmp.ne.s32.totalorder %s55, %s56
      %p68 = scmp.eq.s32.totalorder %s25, 1
      %p69 = por %p67, %p68
      %p71 = scmp.ne.s32.totalorder %s56, %s70
      %p72 = scmp.eq.s32.totalorder %s25, 0
      %p73 = por %p71, %p72
      %s75 = sadd.s32 %s74, 1
      %p78 = scmp.eq.s32.totalorder %s19, 1
      %p79 = scmp.ne.s32.totalorder %s74, %s76
      %p80 = scmp.eq.s32.totalorder %s19, 0
      %p81 = por %p79, %p80
      %p82 = scmp.ne.s32.totalorder %s74, %s76
      %p83 = scmp.eq.s32.totalorder %s24, 1
      %p84 = por %p82, %p83
      %p85 = scmp.ne.s32.totalorder %s76, %s77
      %p86 = scmp.eq.s32.totalorder %s24, 0
      %p87 = por %p85, %p86
      %p88 = scmp.ne.s32.totalorder %s76, %s77
      %p89 = scmp.eq.s32.totalorder %s25, 1
      %p90 = por %p88, %p89
      %p92 = scmp.ne.s32.totalorder %s77, %s91
      %p93 = scmp.eq.s32.totalorder %s25, 0
      %p94 = por %p92, %p93
      %s96 = sadd.s32 %s95, 1
      %p99 = scmp.eq.s32.totalorder %s19, 1
      %p100 = scmp.ne.s32.totalorder %s95, %s97
      %p101 = scmp.eq.s32.totalorder %s19, 0
      %p102 = por %p100, %p101
      %p103 = scmp.ne.s32.totalorder %s95, %s97
      %p104 = scmp.eq.s32.totalorder %s24, 1
      %p105 = por %p103, %p104
      %p106 = scmp.ne.s32.totalorder %s97, %s98
      %p107 = scmp.eq.s32.totalorder %s24, 0
      %p108 = por %p106, %p107
      %p109 = scmp.ne.s32.totalorder %s97, %s98
      %p110 = scmp.eq.s32.totalorder %s25, 1
      %p111 = por %p109, %p110
      %p113 = scmp.ne.s32.totalorder %s98, %s112
      %p114 = scmp.eq.s32.totalorder %s25, 0
      %p115 = por %p113, %p114
      %s117 = sadd.s32 %s116, 1
      %p120 = scmp.eq.s32.totalorder %s19, 1
      %p121 = scmp.ne.s32.totalorder %s116, %s118
      %p122 = scmp.eq.s32.totalorder %s19, 0
      %p123 = por %p121, %p122
      %p124 = scmp.ne.s32.totalorder %s116, %s118
      %p125 = scmp.eq.s32.totalorder %s24, 1
      %p126 = por %p124, %p125
      %p127 = scmp.ne.s32.totalorder %s118, %s119
      %p128 = scmp.eq.s32.totalorder %s24, 0
      %p129 = por %p127, %p128
      %p130 = scmp.ne.s32.totalorder %s118, %s119
      %p131 = scmp.eq.s32.totalorder %s25, 1
      %p132 = por %p130, %p131
      %p134 = scmp.ne.s32.totalorder %s119, %s133
      %p135 = scmp.eq.s32.totalorder %s25, 0
      %p136 = por %p134, %p135
      %s138 = sadd.s32 %s137, 1
      %p141 = scmp.eq.s32.totalorder %s19, 1
      %p142 = scmp.ne.s32.totalorder %s137, %s139
      %p143 = scmp.eq.s32.totalorder %s19, 0
      %p144 = por %p142, %p143
      %p145 = scmp.ne.s32.totalorder %s137, %s139
      %p146 = scmp.eq.s32.totalorder %s24, 1
      %p147 = por %p145, %p146
      %p148 = scmp.ne.s32.totalorder %s139, %s140
      %p149 = scmp.eq.s32.totalorder %s24, 0
      %p150 = por %p148, %p149
      %p151 = scmp.ne.s32.totalorder %s139, %s140
      %p152 = scmp.eq.s32.totalorder %s25, 1
      %p153 = por %p151, %p152
      %p155 = scmp.ne.s32.totalorder %s140, %s154
      %p156 = scmp.eq.s32.totalorder %s25, 0
      %p157 = por %p155, %p156
      %s159 = sadd.s32 %s158, 1
      %p162 = scmp.eq.s32.totalorder %s19, 1
      %p163 = scmp.ne.s32.totalorder %s158, %s160
      %p164 = scmp.eq.s32.totalorder %s19, 0
      %p165 = por %p163, %p164
      %p166 = scmp.ne.s32.totalorder %s158, %s160
      %p167 = scmp.eq.s32.totalorder %s24, 1
      %p168 = por %p166, %p167
      %p169 = scmp.ne.s32.totalorder %s160, %s161
      %p170 = scmp.eq.s32.totalorder %s24, 0
      %p171 = por %p169, %p170
      %p172 = scmp.ne.s32.totalorder %s160, %s161
      %p173 = scmp.eq.s32.totalorder %s25, 1
      %p174 = por %p172, %p173
      %p176 = scmp.ne.s32.totalorder %s161, %s175
      %p177 = scmp.eq.s32.totalorder %s25, 0
      %p178 = por %p176, %p177
      %s180 = sadd.s32 %s179, 1
      %p183 = scmp.eq.s32.totalorder %s19, 1
      %p184 = scmp.ne.s32.totalorder %s179, %s181
      %p185 = scmp.eq.s32.totalorder %s19, 0
      %p186 = por %p184, %p185
      %p187 = scmp.ne.s32.totalorder %s179, %s181
      %p188 = scmp.eq.s32.totalorder %s24, 1
      %p189 = por %p187, %p188
      %p190 = scmp.ne.s32.totalorder %s181, %s182
      %p191 = scmp.eq.s32.totalorder %s24, 0
      %p192 = por %p190, %p191
      %p193 = scmp.ne.s32.totalorder %s181, %s182
      %p194 = scmp.eq.s32.totalorder %s25, 1
      %p195 = por %p193, %p194
      %p197 = scmp.ne.s32.totalorder %s182, %s196
      %p198 = scmp.eq.s32.totalorder %s25, 0
      %p199 = por %p197, %p198
      %s201 = sadd.s32 %s200, 1
      %p204 = scmp.eq.s32.totalorder %s19, 1
      %p205 = scmp.ne.s32.totalorder %s200, %s202
      %p206 = scmp.eq.s32.totalorder %s19, 0
      %p207 = por %p205, %p206
      %p208 = scmp.ne.s32.totalorder %s200, %s202
      %p209 = scmp.eq.s32.totalorder %s24, 1
      %p210 = por %p208, %p209
      %p211 = scmp.ne.s32.totalorder %s202, %s203
      %p212 = scmp.eq.s32.totalorder %s24, 0
      %p213 = por %p211, %p212
      %p214 = scmp.ne.s32.totalorder %s202, %s203
      %p215 = scmp.eq.s32.totalorder %s25, 1
      %p216 = por %p214, %p215
      %p218 = scmp.ne.s32.totalorder %s203, %s217
      %p219 = scmp.eq.s32.totalorder %s25, 0
      %p220 = por %p218, %p219
      %s222 = sadd.s32 %s221, 1
      %p225 = scmp.eq.s32.totalorder %s19, 1
      %p226 = scmp.ne.s32.totalorder %s221, %s223
      %p227 = scmp.eq.s32.totalorder %s19, 0
      %p228 = por %p226, %p227
      %p229 = scmp.ne.s32.totalorder %s221, %s223
      %p230 = scmp.eq.s32.totalorder %s24, 1
      %p231 = por %p229, %p230
      %p232 = scmp.ne.s32.totalorder %s223, %s224
      %p233 = scmp.eq.s32.totalorder %s24, 0
      %p234 = por %p232, %p233
      %p235 = scmp.ne.s32.totalorder %s223, %s224
      %p236 = scmp.eq.s32.totalorder %s25, 1
      %p237 = por %p235, %p236
      %p239 = scmp.ne.s32.totalorder %s224, %s238
      %p240 = scmp.eq.s32.totalorder %s25, 0
      %p241 = por %p239, %p240
      %s242 = ssub.s32 %s19, %s26
      %p243 = scmp.eq.s32.totalorder %s242, 0
      %s245 = sadd.s32 %s244, 1
      %s246 = scalar_select %p243, %s244, %s245
      %p249 = pneg %p243
      %p250 = scmp.eq.s32.totalorder %s19, 1
      %p251 = por %p249, %p250
      %p252 = scmp.ne.s32.totalorder %s244, %s247
      %p253 = scmp.eq.s32.totalorder %s19, 0
      %p254 = por %p252, %p253
      %p255 = scmp.ne.s32.totalorder %s244, %s247
      %p256 = scmp.eq.s32.totalorder %s24, 1
      %p257 = por %p255, %p256
      %p258 = scmp.ne.s32.totalorder %s247, %s248
      %p259 = scmp.eq.s32.totalorder %s24, 0
      %p260 = por %p258, %p259
      %p261 = scmp.ne.s32.totalorder %s247, %s248
      %p262 = scmp.eq.s32.totalorder %s25, 1
      %p263 = por %p261, %p262
      %p265 = scmp.ne.s32.totalorder %s248, %s264
      %p266 = scmp.eq.s32.totalorder %s25, 0
      %p267 = por %p265, %p266
      %p268 = scmp.le.s32.totalorder 1, %s19
      %p269 = scmp.lt.s32.totalorder %s19, 3
      %p270 = pnand %p268, %p269
      %p271 = pneg %p270
      // Predicated region
      $region9: #{tpu_custom_call.1} parent=5 // pred_check
        _
      $region10: #{tpu_custom_call.1} parent=5 // pred_check_branch
        %273 = sbr.rel (%p270) target = $region12
      $region11: #{tpu_custom_call.1} parent=5 // pred_region
        %s274 = ssub.s32 %s19, 1
        // Predicated region
        $region13: #{tpu_custom_call.1} parent=11 // pred_check
          %p275 = pneg %p66
        $region14: #{tpu_custom_call.1} parent=11 // pred_check_branch
          %277 = sbr.rel (%p275) target = $region16
        $region15: #{tpu_custom_call.1} parent=11 // pred_region
          _
        $region16: #{tpu_custom_call.1} parent=11 // pred_fallthru
          _
        // Predicated region
        $region17: #{tpu_custom_call.1} parent=11 // pred_check
          %p278 = pneg %p87
        $region18: #{tpu_custom_call.1} parent=11 // pred_check_branch
          %280 = sbr.rel (%p278) target = $region20
        $region19: #{tpu_custom_call.1} parent=11 // pred_region
          _
        $region20: #{tpu_custom_call.1} parent=11 // pred_fallthru
          _
        // Predicated region
        $region21: #{tpu_custom_call.1} parent=11 // pred_check
          %p281 = pneg %p108
        $region22: #{tpu_custom_call.1} parent=11 // pred_check_branch
          %283 = sbr.rel (%p281) target = $region24
        $region23: #{tpu_custom_call.1} parent=11 // pred_region
          _
        $region24: #{tpu_custom_call.1} parent=11 // pred_fallthru
          _
        // Predicated region
        $region25: #{tpu_custom_call.1} parent=11 // pred_check
          %p284 = pneg %p129
        $region26: #{tpu_custom_call.1} parent=11 // pred_check_branch
          %286 = sbr.rel (%p284) target = $region28
        $region27: #{tpu_custom_call.1} parent=11 // pred_region
          _
        $region28: #{tpu_custom_call.1} parent=11 // pred_fallthru
          _
        // Predicated region
        $region29: #{tpu_custom_call.1} parent=11 // pred_check
          %p287 = pneg %p150
        $region30: #{tpu_custom_call.1} parent=11 // pred_check_branch
          %289 = sbr.rel (%p287) target = $region32
        $region31: #{tpu_custom_call.1} parent=11 // pred_region
          _
        $region32: #{tpu_custom_call.1} parent=11 // pred_fallthru
          _
        // Predicated region
        $region33: #{tpu_custom_call.1} parent=11 // pred_check
          %p290 = pneg %p171
        $region34: #{tpu_custom_call.1} parent=11 // pred_check_branch
          %292 = sbr.rel (%p290) target = $region36
        $region35: #{tpu_custom_call.1} parent=11 // pred_region
          _
        $region36: #{tpu_custom_call.1} parent=11 // pred_fallthru
          _
        // Predicated region
        $region37: #{tpu_custom_call.1} parent=11 // pred_check
          %p293 = pneg %p192
        $region38: #{tpu_custom_call.1} parent=11 // pred_check_branch
          %295 = sbr.rel (%p293) target = $region40
        $region39: #{tpu_custom_call.1} parent=11 // pred_region
          _
        $region40: #{tpu_custom_call.1} parent=11 // pred_fallthru
          _
        // Predicated region
        $region41: #{tpu_custom_call.1} parent=11 // pred_check
          %p296 = pneg %p213
        $region42: #{tpu_custom_call.1} parent=11 // pred_check_branch
          %298 = sbr.rel (%p296) target = $region44
        $region43: #{tpu_custom_call.1} parent=11 // pred_region
          _
        $region44: #{tpu_custom_call.1} parent=11 // pred_fallthru
          _
        // Predicated region
        $region45: #{tpu_custom_call.1} parent=11 // pred_check
          %p299 = pneg %p234
        $region46: #{tpu_custom_call.1} parent=11 // pred_check_branch
          %301 = sbr.rel (%p299) target = $region48
        $region47: #{tpu_custom_call.1} parent=11 // pred_region
          _
        $region48: #{tpu_custom_call.1} parent=11 // pred_fallthru
          _
      $region12: #{tpu_custom_call.1} parent=5 // pred_fallthru
        _
      %p302 = scmp.lt.s32.totalorder %s19, 2
      // Predicated region
      $region49: #{tpu_custom_call.1} parent=5 // pred_check
        %p303 = pneg %p302
      $region50: #{tpu_custom_call.1} parent=5 // pred_check_branch
        %305 = sbr.rel (%p303) target = $region52
      $region51: #{tpu_custom_call.1} parent=5 // pred_region
        // Predicated region
        $region53: #{tpu_custom_call.1} parent=51 // pred_check
          %p306 = pneg %p39
        $region54: #{tpu_custom_call.1} parent=51 // pred_check_branch
          %308 = sbr.rel (%p306) target = $region56
        $region55: #{tpu_custom_call.1} parent=51 // pred_region
          %p309 = scmp.lt.s32.totalorder %s19, 1
          %s310 = scalar_select %p309, %s19, 1
          %s311 = smul.addr %s310, 32
          %s312 = smul.addr %s311, 8
          %s313 = scalar_lea.vmem %s0, %s312
        $region56: #{tpu_custom_call.1} parent=51 // pred_fallthru
          _
      $region52: #{tpu_custom_call.1} parent=5 // pred_fallthru
        _
      %p314 = scmp.le.s32.totalorder 1, %s19
      %p315 = scmp.lt.s32.totalorder %s19, 3
      %p316 = pnand %p314, %p315
      %p317 = pneg %p316
      // Predicated region
      $region57: #{tpu_custom_call.1} parent=5 // pred_check
        _
      $region58: #{tpu_custom_call.1} parent=5 // pred_check_branch
        %319 = sbr.rel (%p316) target = $region60
      $region59: #{tpu_custom_call.1} parent=5 // pred_region
        %s320 = ssub.s32 %s19, 1
        %p321 = scmp.lt.s32.totalorder %s24, 1
        %s322 = scalar_select %p321, %s24, 1
        %s323 = smul.addr %s322, 32
        %s324 = smul.addr %s323, 8
        %s325 = scalar_lea.vmem %s0, %s324
        %p326 = pneg %p45
        %p327 = pneg %p42
        %p328 = pneg %p66
        %p329 = pneg %p63
        %p330 = pneg %p87
        %p331 = pneg %p84
        %p332 = pneg %p108
        %p333 = pneg %p105
        %p334 = pneg %p129
        %p335 = pneg %p126
        %p336 = pneg %p150
        %p337 = pneg %p147
        %p338 = pneg %p171
        %p339 = pneg %p168
        %p340 = pneg %p192
        %p341 = pneg %p189
        %p342 = pneg %p213
        %p343 = pneg %p210
        %p344 = pneg %p234
        %p345 = pneg %p231
        %p346 = pneg %p260
        %p347 = pneg %p257
        %s348 = sand.u32 %s247, 1
        %s349 = scalar_lea.sflag [#allocation4], %s348
        %s350 = sand.u32 %s247, 1
        %s351 = smul.addr %s350, 256
        %s352 = scalar_lea.vmem [#allocation3], %s351
        %p353 = scmp.lt.s32.totalorder %s24, 1
        %s354 = scalar_select %p353, %s24, 1
        %s355 = smul.addr %s354, 32
        %s356 = smul.addr %s355, 8
        %s357 = scalar_lea.vmem %s0, %s356
        %v358 = vld [vmem:[%s357] sm:$0xff]
        %v359 = vld [vmem:[%s357 + $0x8] sm:$0xff]
        %v360 = vld [vmem:[%s357 + $0x10] sm:$0xff]
        %v361 = vld [vmem:[%s357 + $0x18] sm:$0xff]
        %v362 = vld [vmem:[%s357 + $0x20] sm:$0xff]
        %v363 = vld [vmem:[%s357 + $0x28] sm:$0xff]
        %v364 = vld [vmem:[%s357 + $0x30] sm:$0xff]
        %v365 = vld [vmem:[%s357 + $0x38] sm:$0xff]
        %v366 = vld [vmem:[%s357 + $0x40] sm:$0xff]
        %v367 = vld [vmem:[%s357 + $0x48] sm:$0xff]
        %v368 = vld [vmem:[%s357 + $0x50] sm:$0xff]
        %v369 = vld [vmem:[%s357 + $0x58] sm:$0xff]
        %v370 = vld [vmem:[%s357 + $0x60] sm:$0xff]
        %v371 = vld [vmem:[%s357 + $0x68] sm:$0xff]
        %v372 = vld [vmem:[%s357 + $0x70] sm:$0xff]
        %v373 = vld [vmem:[%s357 + $0x78] sm:$0xff]
        %v374 = vld [vmem:[%s357 + $0x80] sm:$0xff]
        %v375 = vld [vmem:[%s357 + $0x88] sm:$0xff]
        %v376 = vld [vmem:[%s357 + $0x90] sm:$0xff]
        %v377 = vld [vmem:[%s357 + $0x98] sm:$0xff]
        %v378 = vld [vmem:[%s357 + $0xa0] sm:$0xff]
        %v379 = vld [vmem:[%s357 + $0xa8] sm:$0xff]
        %v380 = vld [vmem:[%s357 + $0xb0] sm:$0xff]
        %v381 = vld [vmem:[%s357 + $0xb8] sm:$0xff]
        %v382 = vld [vmem:[%s357 + $0xc0] sm:$0xff]
        %v383 = vld [vmem:[%s357 + $0xc8] sm:$0xff]
        %v384 = vld [vmem:[%s357 + $0xd0] sm:$0xff]
        %v385 = vld [vmem:[%s357 + $0xd8] sm:$0xff]
        %v386 = vld [vmem:[%s357 + $0xe0] sm:$0xff]
        %v387 = vld [vmem:[%s357 + $0xe8] sm:$0xff]
        %v388 = vld [vmem:[%s357 + $0xf0] sm:$0xff]
        %v389 = vld [vmem:[%s357 + $0xf8] sm:$0xff]
        %v390 = vld [vmem:[%s1] sm:$0xff]
        %vm391 = vcmask 64512
        %v393 = vsel %vm391, %v358, 0
        %v396 = vsel %vm391, %v359, 0
        %v399 = vsel %vm391, %v360, 0
        %v402 = vsel %vm391, %v361, 0
        %v405 = vsel %vm391, %v362, 0
        %v408 = vsel %vm391, %v363, 0
        %v411 = vsel %vm391, %v364, 0
        %v414 = vsel %vm391, %v365, 0
        %v417 = vsel %vm391, %v366, 0
        %v420 = vsel %vm391, %v367, 0
        %v423 = vsel %vm391, %v368, 0
        %v426 = vsel %vm391, %v369, 0
        %v429 = vsel %vm391, %v370, 0
        %v432 = vsel %vm391, %v371, 0
        %v435 = vsel %vm391, %v372, 0
        %v438 = vsel %vm391, %v373, 0
        %v441 = vsel %vm391, %v374, 0
        %v444 = vsel %vm391, %v375, 0
        %v447 = vsel %vm391, %v376, 0
        %v450 = vsel %vm391, %v377, 0
        %v453 = vsel %vm391, %v378, 0
        %v456 = vsel %vm391, %v379, 0
        %v459 = vsel %vm391, %v380, 0
        %v462 = vsel %vm391, %v381, 0
        %v465 = vsel %vm391, %v382, 0
        %v468 = vsel %vm391, %v383, 0
        %v471 = vsel %vm391, %v384, 0
        %v474 = vsel %vm391, %v385, 0
        %v477 = vsel %vm391, %v386, 0
        %v480 = vsel %vm391, %v387, 0
        %v483 = vsel %vm391, %v388, 0
        %v486 = vsel %vm391, %v389, 0
        %488 = vmatpush.msra.mxu0 0.0
        %489 = vmatpush.msra.mxu0 0.0
        %490 = vmatpush.msra.mxu0 0.0
        %491 = vmatpush.msra.mxu0 0.0
        %492 = vmatpush.msra.mxu0 0.0
        %493 = vmatpush.msra.mxu0 0.0
        %494 = vmatpush.msra.mxu0 0.0
        %495 = vmatpush.msra.mxu0 0.0
        %496 = vmatpush.msra.mxu0 0.0
        %497 = vmatpush.msra.mxu0 0.0
        %498 = vmatpush.msra.mxu0 0.0
        %499 = vmatpush.msra.mxu0 0.0
        %500 = vmatpush.msra.mxu0 0.0
        %501 = vmatpush.msra.mxu0 0.0
        %502 = vmatpush.msra.mxu0 0.0
        %503 = vmatpush.msra.mxu0 %v390
        %504 = vmatmul.f32.gmra.mxu0 %v393
        %v505 = vpop.f32.mrf.mxu0
        %v506 = vadd.f32 0.0, %v505
        %507 = vmatmul.f32.gmra.mxu0 %v396
        %v508 = vpop.f32.mrf.mxu0
        %v509 = vadd.f32 0.0, %v508
        %510 = vmatmul.f32.gmra.mxu0 %v399
        %v511 = vpop.f32.mrf.mxu0
        %v512 = vadd.f32 0.0, %v511
        %513 = vmatmul.f32.gmra.mxu0 %v402
        %v514 = vpop.f32.mrf.mxu0
        %v515 = vadd.f32 0.0, %v514
        %516 = vmatmul.f32.gmra.mxu0 %v405
        %v517 = vpop.f32.mrf.mxu0
        %v518 = vadd.f32 0.0, %v517
        %519 = vmatmul.f32.gmra.mxu0 %v408
        %v520 = vpop.f32.mrf.mxu0
        %v521 = vadd.f32 0.0, %v520
        %522 = vmatmul.f32.gmra.mxu0 %v411
        %v523 = vpop.f32.mrf.mxu0
        %v524 = vadd.f32 0.0, %v523
        %525 = vmatmul.f32.gmra.mxu0 %v414
        %v526 = vpop.f32.mrf.mxu0
        %v527 = vadd.f32 0.0, %v526
        %528 = vmatmul.f32.gmra.mxu0 %v417
        %v529 = vpop.f32.mrf.mxu0
        %v530 = vadd.f32 0.0, %v529
        %531 = vmatmul.f32.gmra.mxu0 %v420
        %v532 = vpop.f32.mrf.mxu0
        %v533 = vadd.f32 0.0, %v532
        %534 = vmatmul.f32.gmra.mxu0 %v423
        %v535 = vpop.f32.mrf.mxu0
        %v536 = vadd.f32 0.0, %v535
        %537 = vmatmul.f32.gmra.mxu0 %v426
        %v538 = vpop.f32.mrf.mxu0
        %v539 = vadd.f32 0.0, %v538
        %540 = vmatmul.f32.gmra.mxu0 %v429
        %v541 = vpop.f32.mrf.mxu0
        %v542 = vadd.f32 0.0, %v541
        %543 = vmatmul.f32.gmra.mxu0 %v432
        %v544 = vpop.f32.mrf.mxu0
        %v545 = vadd.f32 0.0, %v544
        %546 = vmatmul.f32.gmra.mxu0 %v435
        %v547 = vpop.f32.mrf.mxu0
        %v548 = vadd.f32 0.0, %v547
        %549 = vmatmul.f32.gmra.mxu0 %v438
        %v550 = vpop.f32.mrf.mxu0
        %v551 = vadd.f32 0.0, %v550
        %552 = vmatmul.f32.gmra.mxu0 %v441
        %v553 = vpop.f32.mrf.mxu0
        %v554 = vadd.f32 0.0, %v553
        %555 = vmatmul.f32.gmra.mxu0 %v444
        %v556 = vpop.f32.mrf.mxu0
        %v557 = vadd.f32 0.0, %v556
        %558 = vmatmul.f32.gmra.mxu0 %v447
        %v559 = vpop.f32.mrf.mxu0
        %v560 = vadd.f32 0.0, %v559
        %561 = vmatmul.f32.gmra.mxu0 %v450
        %v562 = vpop.f32.mrf.mxu0
        %v563 = vadd.f32 0.0, %v562
        %564 = vmatmul.f32.gmra.mxu0 %v453
        %v565 = vpop.f32.mrf.mxu0
        %v566 = vadd.f32 0.0, %v565
        %567 = vmatmul.f32.gmra.mxu0 %v456
        %v568 = vpop.f32.mrf.mxu0
        %v569 = vadd.f32 0.0, %v568
        %570 = vmatmul.f32.gmra.mxu0 %v459
        %v571 = vpop.f32.mrf.mxu0
        %v572 = vadd.f32 0.0, %v571
        %573 = vmatmul.f32.gmra.mxu0 %v462
        %v574 = vpop.f32.mrf.mxu0
        %v575 = vadd.f32 0.0, %v574
        %576 = vmatmul.f32.gmra.mxu0 %v465
        %v577 = vpop.f32.mrf.mxu0
        %v578 = vadd.f32 0.0, %v577
        %579 = vmatmul.f32.gmra.mxu0 %v468
        %v580 = vpop.f32.mrf.mxu0
        %v581 = vadd.f32 0.0, %v580
        %582 = vmatmul.f32.gmra.mxu0 %v471
        %v583 = vpop.f32.mrf.mxu0
        %v584 = vadd.f32 0.0, %v583
        %585 = vmatmul.f32.gmra.mxu0 %v474
        %v586 = vpop.f32.mrf.mxu0
        %v587 = vadd.f32 0.0, %v586
        %588 = vmatmul.f32.gmra.mxu0 %v477
        %v589 = vpop.f32.mrf.mxu0
        %v590 = vadd.f32 0.0, %v589
        %591 = vmatmul.f32.gmra.mxu0 %v480
        %v592 = vpop.f32.mrf.mxu0
        %v593 = vadd.f32 0.0, %v592
        %594 = vmatmul.f32.gmra.mxu0 %v483
        %v595 = vpop.f32.mrf.mxu0
        %v596 = vadd.f32 0.0, %v595
        %597 = vmatmul.f32.gmra.mxu0 %v486
        %v598 = vpop.f32.mrf.mxu0
        %v599 = vadd.f32 0.0, %v598
        %600 = vdwg.mxu0
        %v601 = vld [vmem:[%s2] sm:$0x1]
        %v603 = vperm.slane %v601, 0
        %v605 = vmul.f32 %v506, %v603
        %v606 = vmul.f32 %v509, %v603
        %v607 = vmul.f32 %v512, %v603
        %v608 = vmul.f32 %v515, %v603
        %v609 = vmul.f32 %v518, %v603
        %v610 = vmul.f32 %v521, %v603
        %v611 = vmul.f32 %v524, %v603
        %v612 = vmul.f32 %v527, %v603
        %v613 = vmul.f32 %v530, %v603
        %v614 = vmul.f32 %v533, %v603
        %v615 = vmul.f32 %v536, %v603
        %v616 = vmul.f32 %v539, %v603
        %v617 = vmul.f32 %v542, %v603
        %v618 = vmul.f32 %v545, %v603
        %v619 = vmul.f32 %v548, %v603
        %v620 = vmul.f32 %v551, %v603
        %v621 = vmul.f32 %v554, %v603
        %v622 = vmul.f32 %v557, %v603
        %v623 = vmul.f32 %v560, %v603
        %v624 = vmul.f32 %v563, %v603
        %v625 = vmul.f32 %v566, %v603
        %v626 = vmul.f32 %v569, %v603
        %v627 = vmul.f32 %v572, %v603
        %v628 = vmul.f32 %v575, %v603
        %v629 = vmul.f32 %v578, %v603
        %v630 = vmul.f32 %v581, %v603
        %v631 = vmul.f32 %v584, %v603
        %v632 = vmul.f32 %v587, %v603
        %v633 = vmul.f32 %v590, %v603
        %v634 = vmul.f32 %v593, %v603
        %v635 = vmul.f32 %v596, %v603
        %v636 = vmul.f32 %v599, %v603
        %v637 = vld [vmem:[%s3] sm:$0x1]
        %v639 = vperm.slane %v637, 0
        %v641 = vadd.f32 %v605, %v639
        %v642 = vadd.f32 %v606, %v639
        %v643 = vadd.f32 %v607, %v639
        %v644 = vadd.f32 %v608, %v639
        %v645 = vadd.f32 %v609, %v639
        %v646 = vadd.f32 %v610, %v639
        %v647 = vadd.f32 %v611, %v639
        %v648 = vadd.f32 %v612, %v639
        %v649 = vadd.f32 %v613, %v639
        %v650 = vadd.f32 %v614, %v639
        %v651 = vadd.f32 %v615, %v639
        %v652 = vadd.f32 %v616, %v639
        %v653 = vadd.f32 %v617, %v639
        %v654 = vadd.f32 %v618, %v639
        %v655 = vadd.f32 %v619, %v639
        %v656 = vadd.f32 %v620, %v639
        %v657 = vadd.f32 %v621, %v639
        %v658 = vadd.f32 %v622, %v639
        %v659 = vadd.f32 %v623, %v639
        %v660 = vadd.f32 %v624, %v639
        %v661 = vadd.f32 %v625, %v639
        %v662 = vadd.f32 %v626, %v639
        %v663 = vadd.f32 %v627, %v639
        %v664 = vadd.f32 %v628, %v639
        %v665 = vadd.f32 %v629, %v639
        %v666 = vadd.f32 %v630, %v639
        %v667 = vadd.f32 %v631, %v639
        %v668 = vadd.f32 %v632, %v639
        %v669 = vadd.f32 %v633, %v639
        %v670 = vadd.f32 %v634, %v639
        %v671 = vadd.f32 %v635, %v639
        %v672 = vadd.f32 %v636, %v639
        %v673 = vmax.f32 %v641, 0.0
        %v674 = vmax.f32 %v642, 0.0
        %v675 = vmax.f32 %v643, 0.0
        %v676 = vmax.f32 %v644, 0.0
        %v677 = vmax.f32 %v645, 0.0
        %v678 = vmax.f32 %v646, 0.0
        %v679 = vmax.f32 %v647, 0.0
        %v680 = vmax.f32 %v648, 0.0
        %v681 = vmax.f32 %v649, 0.0
        %v682 = vmax.f32 %v650, 0.0
        %v683 = vmax.f32 %v651, 0.0
        %v684 = vmax.f32 %v652, 0.0
        %v685 = vmax.f32 %v653, 0.0
        %v686 = vmax.f32 %v654, 0.0
        %v687 = vmax.f32 %v655, 0.0
        %v688 = vmax.f32 %v656, 0.0
        %v689 = vmax.f32 %v657, 0.0
        %v690 = vmax.f32 %v658, 0.0
        %v691 = vmax.f32 %v659, 0.0
        %v692 = vmax.f32 %v660, 0.0
        %v693 = vmax.f32 %v661, 0.0
        %v694 = vmax.f32 %v662, 0.0
        %v695 = vmax.f32 %v663, 0.0
        %v696 = vmax.f32 %v664, 0.0
        %v697 = vmax.f32 %v665, 0.0
        %v698 = vmax.f32 %v666, 0.0
        %v699 = vmax.f32 %v667, 0.0
        %v700 = vmax.f32 %v668, 0.0
        %v701 = vmax.f32 %v669, 0.0
        %v702 = vmax.f32 %v670, 0.0
        %v703 = vmax.f32 %v671, 0.0
        %v704 = vmax.f32 %v672, 0.0
        %vm705 = vcmask 31744
        %706 = vst.msk [vmem:[#allocation2] sm:$0xff] %vm705, 0.0
        %707 = vst.msk [vmem:[#allocation2 + $0x8] sm:$0xff] %vm705, 0.0
        %708 = vst.msk [vmem:[#allocation2 + $0x10] sm:$0xff] %vm705, 0.0
        %vm709 = vcmask 24576
        %710 = vst.msk [vmem:[#allocation2 + $0x18] sm:$0x1] %vm709, 0.0
        %711 = vst.msk [vmem:[#allocation2 + $0x20] sm:$0xff] %vm705, 0.0
        %712 = vst.msk [vmem:[#allocation2 + $0x28] sm:$0xff] %vm705, 0.0
        %713 = vst.msk [vmem:[#allocation2 + $0x30] sm:$0xff] %vm705, 0.0
        %714 = vst.msk [vmem:[#allocation2 + $0x38] sm:$0x1] %vm709, 0.0
        %715 = vst.msk [vmem:[#allocation2 + $0x40] sm:$0xff] %vm705, 0.0
        %716 = vst.msk [vmem:[#allocation2 + $0x48] sm:$0xff] %vm705, 0.0
        %717 = vst.msk [vmem:[#allocation2 + $0x50] sm:$0xff] %vm705, 0.0
        %718 = vst.msk [vmem:[#allocation2 + $0x58] sm:$0x1] %vm709, 0.0
        %719 = vst.msk [vmem:[#allocation2 + $0x60] sm:$0xff] %vm705, 0.0
        %720 = vst.msk [vmem:[#allocation2 + $0x68] sm:$0xff] %vm705, 0.0
        %721 = vst.msk [vmem:[#allocation2 + $0x70] sm:$0xff] %vm705, 0.0
        %722 = vst.msk [vmem:[#allocation2 + $0x78] sm:$0x1] %vm709, 0.0
        %723 = vst.msk [vmem:[#allocation2 + $0x80] sm:$0xff] %vm705, 0.0
        %724 = vst.msk [vmem:[#allocation2 + $0x88] sm:$0xff] %vm705, 0.0
        %725 = vst.msk [vmem:[#allocation2 + $0x90] sm:$0xff] %vm705, 0.0
        %726 = vst.msk [vmem:[#allocation2 + $0x98] sm:$0x1] %vm709, 0.0
        %727 = vst.msk [vmem:[#allocation2 + $0xa0] sm:$0xff] %vm705, 0.0
        %728 = vst.msk [vmem:[#allocation2 + $0xa8] sm:$0xff] %vm705, 0.0
        %729 = vst.msk [vmem:[#allocation2 + $0xb0] sm:$0xff] %vm705, 0.0
        %730 = vst.msk [vmem:[#allocation2 + $0xb8] sm:$0x1] %vm709, 0.0
        %731 = vst.msk [vmem:[#allocation2 + $0xc0] sm:$0xff] %vm705, 0.0
        %732 = vst.msk [vmem:[#allocation2 + $0xc8] sm:$0xff] %vm705, 0.0
        %733 = vst.msk [vmem:[#allocation2 + $0xd0] sm:$0xff] %vm705, 0.0
        %734 = vst.msk [vmem:[#allocation2 + $0xd8] sm:$0x1] %vm709, 0.0
        %735 = vst.msk [vmem:[#allocation2 + $0xe0] sm:$0xff] %vm705, 0.0
        %736 = vst.msk [vmem:[#allocation2 + $0xe8] sm:$0xff] %vm705, 0.0
        %737 = vst.msk [vmem:[#allocation2 + $0xf0] sm:$0xff] %vm705, 0.0
        %738 = vst.msk [vmem:[#allocation2 + $0xf8] sm:$0x1] %vm709, 0.0
        %739 = vst.msk [vmem:[#allocation2 + $0x100] sm:$0xff] %vm705, 0.0
        %740 = vst.msk [vmem:[#allocation2 + $0x108] sm:$0xff] %vm705, 0.0
        %741 = vst.msk [vmem:[#allocation2 + $0x110] sm:$0xff] %vm705, 0.0
        %742 = vst.msk [vmem:[#allocation2 + $0x118] sm:$0x1] %vm709, 0.0
        %743 = vst.msk [vmem:[#allocation2 + $0x120] sm:$0xff] %vm705, 0.0
        %744 = vst.msk [vmem:[#allocation2 + $0x128] sm:$0xff] %vm705, 0.0
        %745 = vst.msk [vmem:[#allocation2 + $0x130] sm:$0xff] %vm705, 0.0
        %746 = vst.msk [vmem:[#allocation2 + $0x138] sm:$0x1] %vm709, 0.0
        %747 = vst.msk [vmem:[#allocation2 + $0x140] sm:$0xff] %vm705, 0.0
        %748 = vst.msk [vmem:[#allocation2 + $0x148] sm:$0xff] %vm705, 0.0
        %749 = vst.msk [vmem:[#allocation2 + $0x150] sm:$0xff] %vm705, 0.0
        %750 = vst.msk [vmem:[#allocation2 + $0x158] sm:$0x1] %vm709, 0.0
        %751 = vst.msk [vmem:[#allocation2 + $0x160] sm:$0xff] %vm705, 0.0
        %752 = vst.msk [vmem:[#allocation2 + $0x168] sm:$0xff] %vm705, 0.0
        %753 = vst.msk [vmem:[#allocation2 + $0x170] sm:$0xff] %vm705, 0.0
        %754 = vst.msk [vmem:[#allocation2 + $0x178] sm:$0x1] %vm709, 0.0
        %755 = vst.msk [vmem:[#allocation2 + $0x180] sm:$0xff] %vm705, 0.0
        %756 = vst.msk [vmem:[#allocation2 + $0x188] sm:$0xff] %vm705, 0.0
        %757 = vst.msk [vmem:[#allocation2 + $0x190] sm:$0xff] %vm705, 0.0
        %758 = vst.msk [vmem:[#allocation2 + $0x198] sm:$0x1] %vm709, 0.0
        %759 = vst.msk [vmem:[#allocation2 + $0x1a0] sm:$0xff] %vm705, 0.0
        %760 = vst.msk [vmem:[#allocation2 + $0x1a8] sm:$0xff] %vm705, 0.0
        %761 = vst.msk [vmem:[#allocation2 + $0x1b0] sm:$0xff] %vm705, 0.0
        %762 = vst.msk [vmem:[#allocation2 + $0x1b8] sm:$0x1] %vm709, 0.0
        %763 = vst.msk [vmem:[#allocation2 + $0x1c0] sm:$0xff] %vm705, 0.0
        %764 = vst.msk [vmem:[#allocation2 + $0x1c8] sm:$0xff] %vm705, 0.0
        %765 = vst.msk [vmem:[#allocation2 + $0x1d0] sm:$0xff] %vm705, 0.0
        %766 = vst.msk [vmem:[#allocation2 + $0x1d8] sm:$0x1] %vm709, 0.0
        %767 = vst.msk [vmem:[#allocation2 + $0x1e0] sm:$0xff] %vm705, 0.0
        %768 = vst.msk [vmem:[#allocation2 + $0x1e8] sm:$0xff] %vm705, 0.0
        %769 = vst.msk [vmem:[#allocation2 + $0x1f0] sm:$0xff] %vm705, 0.0
        %770 = vst.msk [vmem:[#allocation2 + $0x1f8] sm:$0x1] %vm709, 0.0
        %771 = vst.msk [vmem:[#allocation2 + $0x200] sm:$0xff] %vm705, 0.0
        %772 = vst.msk [vmem:[#allocation2 + $0x208] sm:$0xff] %vm705, 0.0
        %773 = vst.msk [vmem:[#allocation2 + $0x210] sm:$0xff] %vm705, 0.0
        %774 = vst.msk [vmem:[#allocation2 + $0x218] sm:$0x1] %vm709, 0.0
        %775 = vst.msk [vmem:[#allocation2 + $0x220] sm:$0xff] %vm705, 0.0
        %776 = vst.msk [vmem:[#allocation2 + $0x228] sm:$0xff] %vm705, 0.0
        %777 = vst.msk [vmem:[#allocation2 + $0x230] sm:$0xff] %vm705, 0.0
        %778 = vst.msk [vmem:[#allocation2 + $0x238] sm:$0x1] %vm709, 0.0
        %s779 = scalar_lea.vmem [#allocation2], 32
        %780 = vst.msk [vmem:[%s779 + $0x8] sm:$0xff] %vm705, %v673
        %781 = vst.msk [vmem:[%s779 + $0x10] sm:$0xff] %vm705, %v674
        %782 = vst.msk [vmem:[%s779 + $0x28] sm:$0xff] %vm705, %v675
        %783 = vst.msk [vmem:[%s779 + $0x30] sm:$0xff] %vm705, %v676
        %784 = vst.msk [vmem:[%s779 + $0x48] sm:$0xff] %vm705, %v677
        %785 = vst.msk [vmem:[%s779 + $0x50] sm:$0xff] %vm705, %v678
        %786 = vst.msk [vmem:[%s779 + $0x68] sm:$0xff] %vm705, %v679
        %787 = vst.msk [vmem:[%s779 + $0x70] sm:$0xff] %vm705, %v680
        %788 = vst.msk [vmem:[%s779 + $0x88] sm:$0xff] %vm705, %v681
        %789 = vst.msk [vmem:[%s779 + $0x90] sm:$0xff] %vm705, %v682
        %790 = vst.msk [vmem:[%s779 + $0xa8] sm:$0xff] %vm705, %v683
        %791 = vst.msk [vmem:[%s779 + $0xb0] sm:$0xff] %vm705, %v684
        %792 = vst.msk [vmem:[%s779 + $0xc8] sm:$0xff] %vm705, %v685
        %793 = vst.msk [vmem:[%s779 + $0xd0] sm:$0xff] %vm705, %v686
        %794 = vst.msk [vmem:[%s779 + $0xe8] sm:$0xff] %vm705, %v687
        %795 = vst.msk [vmem:[%s779 + $0xf0] sm:$0xff] %vm705, %v688
        %796 = vst.msk [vmem:[%s779 + $0x108] sm:$0xff] %vm705, %v689
        %797 = vst.msk [vmem:[%s779 + $0x110] sm:$0xff] %vm705, %v690
        %798 = vst.msk [vmem:[%s779 + $0x128] sm:$0xff] %vm705, %v691
        %799 = vst.msk [vmem:[%s779 + $0x130] sm:$0xff] %vm705, %v692
        %800 = vst.msk [vmem:[%s779 + $0x148] sm:$0xff] %vm705, %v693
        %801 = vst.msk [vmem:[%s779 + $0x150] sm:$0xff] %vm705, %v694
        %802 = vst.msk [vmem:[%s779 + $0x168] sm:$0xff] %vm705, %v695
        %803 = vst.msk [vmem:[%s779 + $0x170] sm:$0xff] %vm705, %v696
        %804 = vst.msk [vmem:[%s779 + $0x188] sm:$0xff] %vm705, %v697
        %805 = vst.msk [vmem:[%s779 + $0x190] sm:$0xff] %vm705, %v698
        %806 = vst.msk [vmem:[%s779 + $0x1a8] sm:$0xff] %vm705, %v699
        %807 = vst.msk [vmem:[%s779 + $0x1b0] sm:$0xff] %vm705, %v700
        %808 = vst.msk [vmem:[%s779 + $0x1c8] sm:$0xff] %vm705, %v701
        %809 = vst.msk [vmem:[%s779 + $0x1d0] sm:$0xff] %vm705, %v702
        %810 = vst.msk [vmem:[%s779 + $0x1e8] sm:$0xff] %vm705, %v703
        %811 = vst.msk [vmem:[%s779 + $0x1f0] sm:$0xff] %vm705, %v704
        %v812 = vld [vmem:[#allocation2] sm:$0xff]
        %v813 = vld [vmem:[#allocation2 + $0x8] sm:$0xff]
        %v814 = vld [vmem:[#allocation2 + $0x10] sm:$0xff]
        %v815 = vld [vmem:[#allocation2 + $0x18] sm:$0x1]
        %v816 = vld [vmem:[#allocation2 + $0x20] sm:$0xff]
        %v817 = vld [vmem:[#allocation2 + $0x28] sm:$0xff]
        %v818 = vld [vmem:[#allocation2 + $0x30] sm:$0xff]
        %v819 = vld [vmem:[#allocation2 + $0x38] sm:$0x1]
        %v820 = vld [vmem:[#allocation2 + $0x40] sm:$0xff]
        %v821 = vld [vmem:[#allocation2 + $0x48] sm:$0xff]
        %v822 = vld [vmem:[#allocation2 + $0x50] sm:$0xff]
        %v823 = vld [vmem:[#allocation2 + $0x58] sm:$0x1]
        %v824 = vld [vmem:[#allocation2 + $0x60] sm:$0xff]
        %v825 = vld [vmem:[#allocation2 + $0x68] sm:$0xff]
        %v826 = vld [vmem:[#allocation2 + $0x70] sm:$0xff]
        %v827 = vld [vmem:[#allocation2 + $0x78] sm:$0x1]
        %v828 = vld [vmem:[#allocation2 + $0x80] sm:$0xff]
        %v829 = vld [vmem:[#allocation2 + $0x88] sm:$0xff]
        %v830 = vld [vmem:[#allocation2 + $0x90] sm:$0xff]
        %v831 = vld [vmem:[#allocation2 + $0x98] sm:$0x1]
        %v832 = vld [vmem:[#allocation2 + $0xa0] sm:$0xff]
        %v833 = vld [vmem:[#allocation2 + $0xa8] sm:$0xff]
        %v834 = vld [vmem:[#allocation2 + $0xb0] sm:$0xff]
        %v835 = vld [vmem:[#allocation2 + $0xb8] sm:$0x1]
        %v836 = vld [vmem:[#allocation2 + $0xc0] sm:$0xff]
        %v837 = vld [vmem:[#allocation2 + $0xc8] sm:$0xff]
        %v838 = vld [vmem:[#allocation2 + $0xd0] sm:$0xff]
        %v839 = vld [vmem:[#allocation2 + $0xd8] sm:$0x1]
        %v840 = vld [vmem:[#allocation2 + $0xe0] sm:$0xff]
        %v841 = vld [vmem:[#allocation2 + $0xe8] sm:$0xff]
        %v842 = vld [vmem:[#allocation2 + $0xf0] sm:$0xff]
        %v843 = vld [vmem:[#allocation2 + $0xf8] sm:$0x1]
        %v844 = vld [vmem:[#allocation2 + $0x100] sm:$0xff]
        %v845 = vld [vmem:[#allocation2 + $0x108] sm:$0xff]
        %v846 = vld [vmem:[#allocation2 + $0x110] sm:$0xff]
        %v847 = vld [vmem:[#allocation2 + $0x118] sm:$0x1]
        %v848 = vld [vmem:[#allocation2 + $0x120] sm:$0xff]
        %v849 = vld [vmem:[#allocation2 + $0x128] sm:$0xff]
        %v850 = vld [vmem:[#allocation2 + $0x130] sm:$0xff]
        %v851 = vld [vmem:[#allocation2 + $0x138] sm:$0x1]
        %v852 = vld [vmem:[#allocation2 + $0x140] sm:$0xff]
        %v853 = vld [vmem:[#allocation2 + $0x148] sm:$0xff]
        %v854 = vld [vmem:[#allocation2 + $0x150] sm:$0xff]
        %v855 = vld [vmem:[#allocation2 + $0x158] sm:$0x1]
        %v856 = vld [vmem:[#allocation2 + $0x160] sm:$0xff]
        %v857 = vld [vmem:[#allocation2 + $0x168] sm:$0xff]
        %v858 = vld [vmem:[#allocation2 + $0x170] sm:$0xff]
        %v859 = vld [vmem:[#allocation2 + $0x178] sm:$0x1]
        %v860 = vld [vmem:[#allocation2 + $0x180] sm:$0xff]
        %v861 = vld [vmem:[#allocation2 + $0x188] sm:$0xff]
        %v862 = vld [vmem:[#allocation2 + $0x190] sm:$0xff]
        %v863 = vld [vmem:[#allocation2 + $0x198] sm:$0x1]
        %v864 = vld [vmem:[#allocation2 + $0x1a0] sm:$0xff]
        %v865 = vld [vmem:[#allocation2 + $0x1a8] sm:$0xff]
        %v866 = vld [vmem:[#allocation2 + $0x1b0] sm:$0xff]
        %v867 = vld [vmem:[#allocation2 + $0x1b8] sm:$0x1]
        %v868 = vld [vmem:[#allocation2 + $0x1c0] sm:$0xff]
        %v869 = vld [vmem:[#allocation2 + $0x1c8] sm:$0xff]
        %v870 = vld [vmem:[#allocation2 + $0x1d0] sm:$0xff]
        %v871 = vld [vmem:[#allocation2 + $0x1d8] sm:$0x1]
        %v872 = vld [vmem:[#allocation2 + $0x1e0] sm:$0xff]
        %v873 = vld [vmem:[#allocation2 + $0x1e8] sm:$0xff]
        %v874 = vld [vmem:[#allocation2 + $0x1f0] sm:$0xff]
        %v875 = vld [vmem:[#allocation2 + $0x1f8] sm:$0x1]
        %v876 = vld [vmem:[#allocation2 + $0x200] sm:$0xff]
        %v877 = vld [vmem:[#allocation2 + $0x208] sm:$0xff]
        %v878 = vld [vmem:[#allocation2 + $0x210] sm:$0xff]
        %v879 = vld [vmem:[#allocation2 + $0x218] sm:$0x1]
        %v880 = vld [vmem:[#allocation2 + $0x220] sm:$0xff]
        %v881 = vld [vmem:[#allocation2 + $0x228] sm:$0xff]
        %v882 = vld [vmem:[#allocation2 + $0x230] sm:$0xff]
        %v883 = vld [vmem:[#allocation2 + $0x238] sm:$0x1]
        %vm916 = vcmask 1046528
        %v917 = vrot.slane %v813, 1
        %v918 = vrot.slane %v814, 1
        %v919 = vsel %vm916, %v917, %v918
        %v920 = vrot.slane %v817, 1
        %v921 = vrot.slane %v818, 1
        %v922 = vsel %vm916, %v920, %v921
        %v923 = vrot.slane %v821, 1
        %v924 = vrot.slane %v822, 1
        %v925 = vsel %vm916, %v923, %v924
        %v926 = vrot.slane %v825, 1
        %v927 = vrot.slane %v826, 1
        %v928 = vsel %vm916, %v926, %v927
        %v929 = vrot.slane %v829, 1
        %v930 = vrot.slane %v830, 1
        %v931 = vsel %vm916, %v929, %v930
        %v932 = vrot.slane %v833, 1
        %v933 = vrot.slane %v834, 1
        %v934 = vsel %vm916, %v932, %v933
        %v935 = vrot.slane %v837, 1
        %v936 = vrot.slane %v838, 1
        %v937 = vsel %vm916, %v935, %v936
        %v938 = vrot.slane %v841, 1
        %v939 = vrot.slane %v842, 1
        %v940 = vsel %vm916, %v938, %v939
        %v941 = vrot.slane %v845, 1
        %v942 = vrot.slane %v846, 1
        %v943 = vsel %vm916, %v941, %v942
        %v944 = vrot.slane %v849, 1
        %v945 = vrot.slane %v850, 1
        %v946 = vsel %vm916, %v944, %v945
        %v947 = vrot.slane %v853, 1
        %v948 = vrot.slane %v854, 1
        %v949 = vsel %vm916, %v947, %v948
        %v950 = vrot.slane %v857, 1
        %v951 = vrot.slane %v858, 1
        %v952 = vsel %vm916, %v950, %v951
        %v953 = vrot.slane %v861, 1
        %v954 = vrot.slane %v862, 1
        %v955 = vsel %vm916, %v953, %v954
        %v956 = vrot.slane %v865, 1
        %v957 = vrot.slane %v866, 1
        %v958 = vsel %vm916, %v956, %v957
        %v959 = vrot.slane %v869, 1
        %v960 = vrot.slane %v870, 1
        %v961 = vsel %vm916, %v959, %v960
        %v962 = vrot.slane %v873, 1
        %v963 = vrot.slane %v874, 1
        %v964 = vsel %vm916, %v962, %v963
        %965 = vrot.lane.b32.xlu0 %v917, 4
        %v966 = vpop.permute.xlu0 %965
        %967 = vrot.lane.b32.xlu0 %v919, 4
        %v968 = vpop.permute.xlu0 %967
        %969 = vrot.lane.b32.xlu0 %v918, 4
        %v970 = vpop.permute.xlu0 %969
        %971 = vrot.lane.b32.xlu0 %v920, 4
        %v972 = vpop.permute.xlu0 %971
        %973 = vrot.lane.b32.xlu0 %v922, 4
        %v974 = vpop.permute.xlu0 %973
        %975 = vrot.lane.b32.xlu0 %v921, 4
        %v976 = vpop.permute.xlu0 %975
        %977 = vrot.lane.b32.xlu0 %v923, 4
        %v978 = vpop.permute.xlu0 %977
        %979 = vrot.lane.b32.xlu0 %v925, 4
        %v980 = vpop.permute.xlu0 %979
        %981 = vrot.lane.b32.xlu0 %v924, 4
        %v982 = vpop.permute.xlu0 %981
        %983 = vrot.lane.b32.xlu0 %v926, 4
        %v984 = vpop.permute.xlu0 %983
        %985 = vrot.lane.b32.xlu0 %v928, 4
        %v986 = vpop.permute.xlu0 %985
        %987 = vrot.lane.b32.xlu0 %v927, 4
        %v988 = vpop.permute.xlu0 %987
        %989 = vrot.lane.b32.xlu0 %v929, 4
        %v990 = vpop.permute.xlu0 %989
        %991 = vrot.lane.b32.xlu0 %v931, 4
        %v992 = vpop.permute.xlu0 %991
        %993 = vrot.lane.b32.xlu0 %v930, 4
        %v994 = vpop.permute.xlu0 %993
        %995 = vrot.lane.b32.xlu0 %v932, 4
        %v996 = vpop.permute.xlu0 %995
        %997 = vrot.lane.b32.xlu0 %v934, 4
        %v998 = vpop.permute.xlu0 %997
        %999 = vrot.lane.b32.xlu0 %v933, 4
        %v1000 = vpop.permute.xlu0 %999
        %1001 = vrot.lane.b32.xlu0 %v935, 4
        %v1002 = vpop.permute.xlu0 %1001
        %1003 = vrot.lane.b32.xlu0 %v937, 4
        %v1004 = vpop.permute.xlu0 %1003
        %1005 = vrot.lane.b32.xlu0 %v936, 4
        %v1006 = vpop.permute.xlu0 %1005
        %1007 = vrot.lane.b32.xlu0 %v938, 4
        %v1008 = vpop.permute.xlu0 %1007
        %1009 = vrot.lane.b32.xlu0 %v940, 4
        %v1010 = vpop.permute.xlu0 %1009
        %1011 = vrot.lane.b32.xlu0 %v939, 4
        %v1012 = vpop.permute.xlu0 %1011
        %1013 = vrot.lane.b32.xlu0 %v941, 4
        %v1014 = vpop.permute.xlu0 %1013
        %1015 = vrot.lane.b32.xlu0 %v943, 4
        %v1016 = vpop.permute.xlu0 %1015
        %1017 = vrot.lane.b32.xlu0 %v942, 4
        %v1018 = vpop.permute.xlu0 %1017
        %1019 = vrot.lane.b32.xlu0 %v944, 4
        %v1020 = vpop.permute.xlu0 %1019
        %1021 = vrot.lane.b32.xlu0 %v946, 4
        %v1022 = vpop.permute.xlu0 %1021
        %1023 = vrot.lane.b32.xlu0 %v945, 4
        %v1024 = vpop.permute.xlu0 %1023
        %1025 = vrot.lane.b32.xlu0 %v947, 4
        %v1026 = vpop.permute.xlu0 %1025
        %1027 = vrot.lane.b32.xlu0 %v949, 4
        %v1028 = vpop.permute.xlu0 %1027
        %1029 = vrot.lane.b32.xlu0 %v948, 4
        %v1030 = vpop.permute.xlu0 %1029
        %1031 = vrot.lane.b32.xlu0 %v950, 4
        %v1032 = vpop.permute.xlu0 %1031
        %1033 = vrot.lane.b32.xlu0 %v952, 4
        %v1034 = vpop.permute.xlu0 %1033
        %1035 = vrot.lane.b32.xlu0 %v951, 4
        %v1036 = vpop.permute.xlu0 %1035
        %1037 = vrot.lane.b32.xlu0 %v953, 4
        %v1038 = vpop.permute.xlu0 %1037
        %1039 = vrot.lane.b32.xlu0 %v955, 4
        %v1040 = vpop.permute.xlu0 %1039
        %1041 = vrot.lane.b32.xlu0 %v954, 4
        %v1042 = vpop.permute.xlu0 %1041
        %1043 = vrot.lane.b32.xlu0 %v956, 4
        %v1044 = vpop.permute.xlu0 %1043
        %1045 = vrot.lane.b32.xlu0 %v958, 4
        %v1046 = vpop.permute.xlu0 %1045
        %1047 = vrot.lane.b32.xlu0 %v957, 4
        %v1048 = vpop.permute.xlu0 %1047
        %1049 = vrot.lane.b32.xlu0 %v959, 4
        %v1050 = vpop.permute.xlu0 %1049
        %1051 = vrot.lane.b32.xlu0 %v961, 4
        %v1052 = vpop.permute.xlu0 %1051
        %1053 = vrot.lane.b32.xlu0 %v960, 4
        %v1054 = vpop.permute.xlu0 %1053
        %1055 = vrot.lane.b32.xlu0 %v962, 4
        %v1056 = vpop.permute.xlu0 %1055
        %1057 = vrot.lane.b32.xlu0 %v964, 4
        %v1058 = vpop.permute.xlu0 %1057
        %1059 = vrot.lane.b32.xlu0 %v963, 4
        %v1060 = vpop.permute.xlu0 %1059
        %vm1125 = vcmask 1045504
        %v1126 = vrot.slane %v813, 2
        %v1127 = vrot.slane %v814, 2
        %v1128 = vsel %vm1125, %v1126, %v1127
        %v1129 = vrot.slane %v815, 2
        %v1130 = vsel %vm1125, %v1127, %v1129
        %v1131 = vrot.slane %v817, 2
        %v1132 = vrot.slane %v818, 2
        %v1133 = vsel %vm1125, %v1131, %v1132
        %v1134 = vrot.slane %v819, 2
        %v1135 = vsel %vm1125, %v1132, %v1134
        %v1136 = vrot.slane %v821, 2
        %v1137 = vrot.slane %v822, 2
        %v1138 = vsel %vm1125, %v1136, %v1137
        %v1139 = vrot.slane %v823, 2
        %v1140 = vsel %vm1125, %v1137, %v1139
        %v1141 = vrot.slane %v825, 2
        %v1142 = vrot.slane %v826, 2
        %v1143 = vsel %vm1125, %v1141, %v1142
        %v1144 = vrot.slane %v827, 2
        %v1145 = vsel %vm1125, %v1142, %v1144
        %v1146 = vrot.slane %v829, 2
        %v1147 = vrot.slane %v830, 2
        %v1148 = vsel %vm1125, %v1146, %v1147
        %v1149 = vrot.slane %v831, 2
        %v1150 = vsel %vm1125, %v1147, %v1149
        %v1151 = vrot.slane %v833, 2
        %v1152 = vrot.slane %v834, 2
        %v1153 = vsel %vm1125, %v1151, %v1152
        %v1154 = vrot.slane %v835, 2
        %v1155 = vsel %vm1125, %v1152, %v1154
        %v1156 = vrot.slane %v837, 2
        %v1157 = vrot.slane %v838, 2
        %v1158 = vsel %vm1125, %v1156, %v1157
        %v1159 = vrot.slane %v839, 2
        %v1160 = vsel %vm1125, %v1157, %v1159
        %v1161 = vrot.slane %v841, 2
        %v1162 = vrot.slane %v842, 2
        %v1163 = vsel %vm1125, %v1161, %v1162
        %v1164 = vrot.slane %v843, 2
        %v1165 = vsel %vm1125, %v1162, %v1164
        %v1166 = vrot.slane %v845, 2
        %v1167 = vrot.slane %v846, 2
        %v1168 = vsel %vm1125, %v1166, %v1167
        %v1169 = vrot.slane %v847, 2
        %v1170 = vsel %vm1125, %v1167, %v1169
        %v1171 = vrot.slane %v849, 2
        %v1172 = vrot.slane %v850, 2
        %v1173 = vsel %vm1125, %v1171, %v1172
        %v1174 = vrot.slane %v851, 2
        %v1175 = vsel %vm1125, %v1172, %v1174
        %v1176 = vrot.slane %v853, 2
        %v1177 = vrot.slane %v854, 2
        %v1178 = vsel %vm1125, %v1176, %v1177
        %v1179 = vrot.slane %v855, 2
        %v1180 = vsel %vm1125, %v1177, %v1179
        %v1181 = vrot.slane %v857, 2
        %v1182 = vrot.slane %v858, 2
        %v1183 = vsel %vm1125, %v1181, %v1182
        %v1184 = vrot.slane %v859, 2
        %v1185 = vsel %vm1125, %v1182, %v1184
        %v1186 = vrot.slane %v861, 2
        %v1187 = vrot.slane %v862, 2
        %v1188 = vsel %vm1125, %v1186, %v1187
        %v1189 = vrot.slane %v863, 2
        %v1190 = vsel %vm1125, %v1187, %v1189
        %v1191 = vrot.slane %v865, 2
        %v1192 = vrot.slane %v866, 2
        %v1193 = vsel %vm1125, %v1191, %v1192
        %v1194 = vrot.slane %v867, 2
        %v1195 = vsel %vm1125, %v1192, %v1194
        %v1196 = vrot.slane %v869, 2
        %v1197 = vrot.slane %v870, 2
        %v1198 = vsel %vm1125, %v1196, %v1197
        %v1199 = vrot.slane %v871, 2
        %v1200 = vsel %vm1125, %v1197, %v1199
        %v1201 = vrot.slane %v873, 2
        %v1202 = vrot.slane %v874, 2
        %v1203 = vsel %vm1125, %v1201, %v1202
        %v1204 = vrot.slane %v875, 2
        %v1205 = vsel %vm1125, %v1202, %v1204
        %1206 = vrot.lane.b32.xlu0 %v1126, 8
        %v1207 = vpop.permute.xlu0 %1206
        %1208 = vrot.lane.b32.xlu0 %v1128, 8
        %v1209 = vpop.permute.xlu0 %1208
        %1210 = vrot.lane.b32.xlu0 %v1130, 8
        %v1211 = vpop.permute.xlu0 %1210
        %1212 = vrot.lane.b32.xlu0 %v1131, 8
        %v1213 = vpop.permute.xlu0 %1212
        %1214 = vrot.lane.b32.xlu0 %v1133, 8
        %v1215 = vpop.permute.xlu0 %1214
        %1216 = vrot.lane.b32.xlu0 %v1135, 8
        %v1217 = vpop.permute.xlu0 %1216
        %1218 = vrot.lane.b32.xlu0 %v1136, 8
        %v1219 = vpop.permute.xlu0 %1218
        %1220 = vrot.lane.b32.xlu0 %v1138, 8
        %v1221 = vpop.permute.xlu0 %1220
        %1222 = vrot.lane.b32.xlu0 %v1140, 8
        %v1223 = vpop.permute.xlu0 %1222
        %1224 = vrot.lane.b32.xlu0 %v1141, 8
        %v1225 = vpop.permute.xlu0 %1224
        %1226 = vrot.lane.b32.xlu0 %v1143, 8
        %v1227 = vpop.permute.xlu0 %1226
        %1228 = vrot.lane.b32.xlu0 %v1145, 8
        %v1229 = vpop.permute.xlu0 %1228
        %1230 = vrot.lane.b32.xlu0 %v1146, 8
        %v1231 = vpop.permute.xlu0 %1230
        %1232 = vrot.lane.b32.xlu0 %v1148, 8
        %v1233 = vpop.permute.xlu0 %1232
        %1234 = vrot.lane.b32.xlu0 %v1150, 8
        %v1235 = vpop.permute.xlu0 %1234
        %1236 = vrot.lane.b32.xlu0 %v1151, 8
        %v1237 = vpop.permute.xlu0 %1236
        %1238 = vrot.lane.b32.xlu0 %v1153, 8
        %v1239 = vpop.permute.xlu0 %1238
        %1240 = vrot.lane.b32.xlu0 %v1155, 8
        %v1241 = vpop.permute.xlu0 %1240
        %1242 = vrot.lane.b32.xlu0 %v1156, 8
        %v1243 = vpop.permute.xlu0 %1242
        %1244 = vrot.lane.b32.xlu0 %v1158, 8
        %v1245 = vpop.permute.xlu0 %1244
        %1246 = vrot.lane.b32.xlu0 %v1160, 8
        %v1247 = vpop.permute.xlu0 %1246
        %1248 = vrot.lane.b32.xlu0 %v1161, 8
        %v1249 = vpop.permute.xlu0 %1248
        %1250 = vrot.lane.b32.xlu0 %v1163, 8
        %v1251 = vpop.permute.xlu0 %1250
        %1252 = vrot.lane.b32.xlu0 %v1165, 8
        %v1253 = vpop.permute.xlu0 %1252
        %1254 = vrot.lane.b32.xlu0 %v1166, 8
        %v1255 = vpop.permute.xlu0 %1254
        %1256 = vrot.lane.b32.xlu0 %v1168, 8
        %v1257 = vpop.permute.xlu0 %1256
        %1258 = vrot.lane.b32.xlu0 %v1170, 8
        %v1259 = vpop.permute.xlu0 %1258
        %1260 = vrot.lane.b32.xlu0 %v1171, 8
        %v1261 = vpop.permute.xlu0 %1260
        %1262 = vrot.lane.b32.xlu0 %v1173, 8
        %v1263 = vpop.permute.xlu0 %1262
        %1264 = vrot.lane.b32.xlu0 %v1175, 8
        %v1265 = vpop.permute.xlu0 %1264
        %1266 = vrot.lane.b32.xlu0 %v1176, 8
        %v1267 = vpop.permute.xlu0 %1266
        %1268 = vrot.lane.b32.xlu0 %v1178, 8
        %v1269 = vpop.permute.xlu0 %1268
        %1270 = vrot.lane.b32.xlu0 %v1180, 8
        %v1271 = vpop.permute.xlu0 %1270
        %1272 = vrot.lane.b32.xlu0 %v1181, 8
        %v1273 = vpop.permute.xlu0 %1272
        %1274 = vrot.lane.b32.xlu0 %v1183, 8
        %v1275 = vpop.permute.xlu0 %1274
        %1276 = vrot.lane.b32.xlu0 %v1185, 8
        %v1277 = vpop.permute.xlu0 %1276
        %1278 = vrot.lane.b32.xlu0 %v1186, 8
        %v1279 = vpop.permute.xlu0 %1278
        %1280 = vrot.lane.b32.xlu0 %v1188, 8
        %v1281 = vpop.permute.xlu0 %1280
        %1282 = vrot.lane.b32.xlu0 %v1190, 8
        %v1283 = vpop.permute.xlu0 %1282
        %1284 = vrot.lane.b32.xlu0 %v1191, 8
        %v1285 = vpop.permute.xlu0 %1284
        %1286 = vrot.lane.b32.xlu0 %v1193, 8
        %v1287 = vpop.permute.xlu0 %1286
        %1288 = vrot.lane.b32.xlu0 %v1195, 8
        %v1289 = vpop.permute.xlu0 %1288
        %1290 = vrot.lane.b32.xlu0 %v1196, 8
        %v1291 = vpop.permute.xlu0 %1290
        %1292 = vrot.lane.b32.xlu0 %v1198, 8
        %v1293 = vpop.permute.xlu0 %1292
        %1294 = vrot.lane.b32.xlu0 %v1200, 8
        %v1295 = vpop.permute.xlu0 %1294
        %1296 = vrot.lane.b32.xlu0 %v1201, 8
        %v1297 = vpop.permute.xlu0 %1296
        %1298 = vrot.lane.b32.xlu0 %v1203, 8
        %v1299 = vpop.permute.xlu0 %1298
        %1300 = vrot.lane.b32.xlu0 %v1205, 8
        %v1301 = vpop.permute.xlu0 %1300
        %1368 = vrot.lane.b32.xlu0 %v816, 12
        %v1369 = vpop.permute.xlu0 %1368
        %1370 = vrot.lane.b32.xlu0 %v817, 12
        %v1371 = vpop.permute.xlu0 %1370
        %1372 = vrot.lane.b32.xlu0 %v818, 12
        %v1373 = vpop.permute.xlu0 %1372
        %1374 = vrot.lane.b32.xlu0 %v820, 12
        %v1375 = vpop.permute.xlu0 %1374
        %1376 = vrot.lane.b32.xlu0 %v821, 12
        %v1377 = vpop.permute.xlu0 %1376
        %1378 = vrot.lane.b32.xlu0 %v822, 12
        %v1379 = vpop.permute.xlu0 %1378
        %1380 = vrot.lane.b32.xlu0 %v824, 12
        %v1381 = vpop.permute.xlu0 %1380
        %1382 = vrot.lane.b32.xlu0 %v825, 12
        %v1383 = vpop.permute.xlu0 %1382
        %1384 = vrot.lane.b32.xlu0 %v826, 12
        %v1385 = vpop.permute.xlu0 %1384
        %1386 = vrot.lane.b32.xlu0 %v828, 12
        %v1387 = vpop.permute.xlu0 %1386
        %1388 = vrot.lane.b32.xlu0 %v829, 12
        %v1389 = vpop.permute.xlu0 %1388
        %1390 = vrot.lane.b32.xlu0 %v830, 12
        %v1391 = vpop.permute.xlu0 %1390
        %1392 = vrot.lane.b32.xlu0 %v832, 12
        %v1393 = vpop.permute.xlu0 %1392
        %1394 = vrot.lane.b32.xlu0 %v833, 12
        %v1395 = vpop.permute.xlu0 %1394
        %1396 = vrot.lane.b32.xlu0 %v834, 12
        %v1397 = vpop.permute.xlu0 %1396
        %1398 = vrot.lane.b32.xlu0 %v836, 12
        %v1399 = vpop.permute.xlu0 %1398
        %1400 = vrot.lane.b32.xlu0 %v837, 12
        %v1401 = vpop.permute.xlu0 %1400
        %1402 = vrot.lane.b32.xlu0 %v838, 12
        %v1403 = vpop.permute.xlu0 %1402
        %1404 = vrot.lane.b32.xlu0 %v840, 12
        %v1405 = vpop.permute.xlu0 %1404
        %1406 = vrot.lane.b32.xlu0 %v841, 12
        %v1407 = vpop.permute.xlu0 %1406
        %1408 = vrot.lane.b32.xlu0 %v842, 12
        %v1409 = vpop.permute.xlu0 %1408
        %1410 = vrot.lane.b32.xlu0 %v844, 12
        %v1411 = vpop.permute.xlu0 %1410
        %1412 = vrot.lane.b32.xlu0 %v845, 12
        %v1413 = vpop.permute.xlu0 %1412
        %1414 = vrot.lane.b32.xlu0 %v846, 12
        %v1415 = vpop.permute.xlu0 %1414
        %1416 = vrot.lane.b32.xlu0 %v848, 12
        %v1417 = vpop.permute.xlu0 %1416
        %1418 = vrot.lane.b32.xlu0 %v849, 12
        %v1419 = vpop.permute.xlu0 %1418
        %1420 = vrot.lane.b32.xlu0 %v850, 12
        %v1421 = vpop.permute.xlu0 %1420
        %1422 = vrot.lane.b32.xlu0 %v852, 12
        %v1423 = vpop.permute.xlu0 %1422
        %1424 = vrot.lane.b32.xlu0 %v853, 12
        %v1425 = vpop.permute.xlu0 %1424
        %1426 = vrot.lane.b32.xlu0 %v854, 12
        %v1427 = vpop.permute.xlu0 %1426
        %1428 = vrot.lane.b32.xlu0 %v856, 12
        %v1429 = vpop.permute.xlu0 %1428
        %1430 = vrot.lane.b32.xlu0 %v857, 12
        %v1431 = vpop.permute.xlu0 %1430
        %1432 = vrot.lane.b32.xlu0 %v858, 12
        %v1433 = vpop.permute.xlu0 %1432
        %1434 = vrot.lane.b32.xlu0 %v860, 12
        %v1435 = vpop.permute.xlu0 %1434
        %1436 = vrot.lane.b32.xlu0 %v861, 12
        %v1437 = vpop.permute.xlu0 %1436
        %1438 = vrot.lane.b32.xlu0 %v862, 12
        %v1439 = vpop.permute.xlu0 %1438
        %1440 = vrot.lane.b32.xlu0 %v864, 12
        %v1441 = vpop.permute.xlu0 %1440
        %1442 = vrot.lane.b32.xlu0 %v865, 12
        %v1443 = vpop.permute.xlu0 %1442
        %1444 = vrot.lane.b32.xlu0 %v866, 12
        %v1445 = vpop.permute.xlu0 %1444
        %1446 = vrot.lane.b32.xlu0 %v868, 12
        %v1447 = vpop.permute.xlu0 %1446
        %1448 = vrot.lane.b32.xlu0 %v869, 12
        %v1449 = vpop.permute.xlu0 %1448
        %1450 = vrot.lane.b32.xlu0 %v870, 12
        %v1451 = vpop.permute.xlu0 %1450
        %1452 = vrot.lane.b32.xlu0 %v872, 12
        %v1453 = vpop.permute.xlu0 %1452
        %1454 = vrot.lane.b32.xlu0 %v873, 12
        %v1455 = vpop.permute.xlu0 %1454
        %1456 = vrot.lane.b32.xlu0 %v874, 12
        %v1457 = vpop.permute.xlu0 %1456
        %1458 = vrot.lane.b32.xlu0 %v876, 12
        %v1459 = vpop.permute.xlu0 %1458
        %1460 = vrot.lane.b32.xlu0 %v877, 12
        %v1461 = vpop.permute.xlu0 %1460
        %1462 = vrot.lane.b32.xlu0 %v878, 12
        %v1463 = vpop.permute.xlu0 %1462
        %v1512 = vrot.slane %v877, 1
        %v1513 = vrot.slane %v878, 1
        %v1514 = vsel %vm916, %v1512, %v1513
        %1515 = vrot.lane.b32.xlu0 %v920, 16
        %v1516 = vpop.permute.xlu0 %1515
        %1517 = vrot.lane.b32.xlu0 %v922, 16
        %v1518 = vpop.permute.xlu0 %1517
        %1519 = vrot.lane.b32.xlu0 %v921, 16
        %v1520 = vpop.permute.xlu0 %1519
        %1521 = vrot.lane.b32.xlu0 %v923, 16
        %v1522 = vpop.permute.xlu0 %1521
        %1523 = vrot.lane.b32.xlu0 %v925, 16
        %v1524 = vpop.permute.xlu0 %1523
        %1525 = vrot.lane.b32.xlu0 %v924, 16
        %v1526 = vpop.permute.xlu0 %1525
        %1527 = vrot.lane.b32.xlu0 %v926, 16
        %v1528 = vpop.permute.xlu0 %1527
        %1529 = vrot.lane.b32.xlu0 %v928, 16
        %v1530 = vpop.permute.xlu0 %1529
        %1531 = vrot.lane.b32.xlu0 %v927, 16
        %v1532 = vpop.permute.xlu0 %1531
        %1533 = vrot.lane.b32.xlu0 %v929, 16
        %v1534 = vpop.permute.xlu0 %1533
        %1535 = vrot.lane.b32.xlu0 %v931, 16
        %v1536 = vpop.permute.xlu0 %1535
        %1537 = vrot.lane.b32.xlu0 %v930, 16
        %v1538 = vpop.permute.xlu0 %1537
        %1539 = vrot.lane.b32.xlu0 %v932, 16
        %v1540 = vpop.permute.xlu0 %1539
        %1541 = vrot.lane.b32.xlu0 %v934, 16
        %v1542 = vpop.permute.xlu0 %1541
        %1543 = vrot.lane.b32.xlu0 %v933, 16
        %v1544 = vpop.permute.xlu0 %1543
        %1545 = vrot.lane.b32.xlu0 %v935, 16
        %v1546 = vpop.permute.xlu0 %1545
        %1547 = vrot.lane.b32.xlu0 %v937, 16
        %v1548 = vpop.permute.xlu0 %1547
        %1549 = vrot.lane.b32.xlu0 %v936, 16
        %v1550 = vpop.permute.xlu0 %1549
        %1551 = vrot.lane.b32.xlu0 %v938, 16
        %v1552 = vpop.permute.xlu0 %1551
        %1553 = vrot.lane.b32.xlu0 %v940, 16
        %v1554 = vpop.permute.xlu0 %1553
        %1555 = vrot.lane.b32.xlu0 %v939, 16
        %v1556 = vpop.permute.xlu0 %1555
        %1557 = vrot.lane.b32.xlu0 %v941, 16
        %v1558 = vpop.permute.xlu0 %1557
        %1559 = vrot.lane.b32.xlu0 %v943, 16
        %v1560 = vpop.permute.xlu0 %1559
        %1561 = vrot.lane.b32.xlu0 %v942, 16
        %v1562 = vpop.permute.xlu0 %1561
        %1563 = vrot.lane.b32.xlu0 %v944, 16
        %v1564 = vpop.permute.xlu0 %1563
        %1565 = vrot.lane.b32.xlu0 %v946, 16
        %v1566 = vpop.permute.xlu0 %1565
        %1567 = vrot.lane.b32.xlu0 %v945, 16
        %v1568 = vpop.permute.xlu0 %1567
        %1569 = vrot.lane.b32.xlu0 %v947, 16
        %v1570 = vpop.permute.xlu0 %1569
        %1571 = vrot.lane.b32.xlu0 %v949, 16
        %v1572 = vpop.permute.xlu0 %1571
        %1573 = vrot.lane.b32.xlu0 %v948, 16
        %v1574 = vpop.permute.xlu0 %1573
        %1575 = vrot.lane.b32.xlu0 %v950, 16
        %v1576 = vpop.permute.xlu0 %1575
        %1577 = vrot.lane.b32.xlu0 %v952, 16
        %v1578 = vpop.permute.xlu0 %1577
        %1579 = vrot.lane.b32.xlu0 %v951, 16
        %v1580 = vpop.permute.xlu0 %1579
        %1581 = vrot.lane.b32.xlu0 %v953, 16
        %v1582 = vpop.permute.xlu0 %1581
        %1583 = vrot.lane.b32.xlu0 %v955, 16
        %v1584 = vpop.permute.xlu0 %1583
        %1585 = vrot.lane.b32.xlu0 %v954, 16
        %v1586 = vpop.permute.xlu0 %1585
        %1587 = vrot.lane.b32.xlu0 %v956, 16
        %v1588 = vpop.permute.xlu0 %1587
        %1589 = vrot.lane.b32.xlu0 %v958, 16
        %v1590 = vpop.permute.xlu0 %1589
        %1591 = vrot.lane.b32.xlu0 %v957, 16
        %v1592 = vpop.permute.xlu0 %1591
        %1593 = vrot.lane.b32.xlu0 %v959, 16
        %v1594 = vpop.permute.xlu0 %1593
        %1595 = vrot.lane.b32.xlu0 %v961, 16
        %v1596 = vpop.permute.xlu0 %1595
        %1597 = vrot.lane.b32.xlu0 %v960, 16
        %v1598 = vpop.permute.xlu0 %1597
        %1599 = vrot.lane.b32.xlu0 %v962, 16
        %v1600 = vpop.permute.xlu0 %1599
        %1601 = vrot.lane.b32.xlu0 %v964, 16
        %v1602 = vpop.permute.xlu0 %1601
        %1603 = vrot.lane.b32.xlu0 %v963, 16
        %v1604 = vpop.permute.xlu0 %1603
        %1605 = vrot.lane.b32.xlu0 %v1512, 16
        %v1606 = vpop.permute.xlu0 %1605
        %1607 = vrot.lane.b32.xlu0 %v1514, 16
        %v1608 = vpop.permute.xlu0 %1607
        %1609 = vrot.lane.b32.xlu0 %v1513, 16
        %v1610 = vpop.permute.xlu0 %1609
        %v1660 = vrot.slane %v877, 2
        %v1661 = vrot.slane %v878, 2
        %v1662 = vsel %vm1125, %v1660, %v1661
        %v1663 = vrot.slane %v879, 2
        %v1664 = vsel %vm1125, %v1661, %v1663
        %1665 = vrot.lane.b32.xlu0 %v1131, 20
        %v1666 = vpop.permute.xlu0 %1665
        %1667 = vrot.lane.b32.xlu0 %v1133, 20
        %v1668 = vpop.permute.xlu0 %1667
        %1669 = vrot.lane.b32.xlu0 %v1135, 20
        %v1670 = vpop.permute.xlu0 %1669
        %1671 = vrot.lane.b32.xlu0 %v1136, 20
        %v1672 = vpop.permute.xlu0 %1671
        %1673 = vrot.lane.b32.xlu0 %v1138, 20
        %v1674 = vpop.permute.xlu0 %1673
        %1675 = vrot.lane.b32.xlu0 %v1140, 20
        %v1676 = vpop.permute.xlu0 %1675
        %1677 = vrot.lane.b32.xlu0 %v1141, 20
        %v1678 = vpop.permute.xlu0 %1677
        %1679 = vrot.lane.b32.xlu0 %v1143, 20
        %v1680 = vpop.permute.xlu0 %1679
        %1681 = vrot.lane.b32.xlu0 %v1145, 20
        %v1682 = vpop.permute.xlu0 %1681
        %1683 = vrot.lane.b32.xlu0 %v1146, 20
        %v1684 = vpop.permute.xlu0 %1683
        %1685 = vrot.lane.b32.xlu0 %v1148, 20
        %v1686 = vpop.permute.xlu0 %1685
        %1687 = vrot.lane.b32.xlu0 %v1150, 20
        %v1688 = vpop.permute.xlu0 %1687
        %1689 = vrot.lane.b32.xlu0 %v1151, 20
        %v1690 = vpop.permute.xlu0 %1689
        %1691 = vrot.lane.b32.xlu0 %v1153, 20
        %v1692 = vpop.permute.xlu0 %1691
        %1693 = vrot.lane.b32.xlu0 %v1155, 20
        %v1694 = vpop.permute.xlu0 %1693
        %1695 = vrot.lane.b32.xlu0 %v1156, 20
        %v1696 = vpop.permute.xlu0 %1695
        %1697 = vrot.lane.b32.xlu0 %v1158, 20
        %v1698 = vpop.permute.xlu0 %1697
        %1699 = vrot.lane.b32.xlu0 %v1160, 20
        %v1700 = vpop.permute.xlu0 %1699
        %1701 = vrot.lane.b32.xlu0 %v1161, 20
        %v1702 = vpop.permute.xlu0 %1701
        %1703 = vrot.lane.b32.xlu0 %v1163, 20
        %v1704 = vpop.permute.xlu0 %1703
        %1705 = vrot.lane.b32.xlu0 %v1165, 20
        %v1706 = vpop.permute.xlu0 %1705
        %1707 = vrot.lane.b32.xlu0 %v1166, 20
        %v1708 = vpop.permute.xlu0 %1707
        %1709 = vrot.lane.b32.xlu0 %v1168, 20
        %v1710 = vpop.permute.xlu0 %1709
        %1711 = vrot.lane.b32.xlu0 %v1170, 20
        %v1712 = vpop.permute.xlu0 %1711
        %1713 = vrot.lane.b32.xlu0 %v1171, 20
        %v1714 = vpop.permute.xlu0 %1713
        %1715 = vrot.lane.b32.xlu0 %v1173, 20
        %v1716 = vpop.permute.xlu0 %1715
        %1717 = vrot.lane.b32.xlu0 %v1175, 20
        %v1718 = vpop.permute.xlu0 %1717
        %1719 = vrot.lane.b32.xlu0 %v1176, 20
        %v1720 = vpop.permute.xlu0 %1719
        %1721 = vrot.lane.b32.xlu0 %v1178, 20
        %v1722 = vpop.permute.xlu0 %1721
        %1723 = vrot.lane.b32.xlu0 %v1180, 20
        %v1724 = vpop.permute.xlu0 %1723
        %1725 = vrot.lane.b32.xlu0 %v1181, 20
        %v1726 = vpop.permute.xlu0 %1725
        %1727 = vrot.lane.b32.xlu0 %v1183, 20
        %v1728 = vpop.permute.xlu0 %1727
        %1729 = vrot.lane.b32.xlu0 %v1185, 20
        %v1730 = vpop.permute.xlu0 %1729
        %1731 = vrot.lane.b32.xlu0 %v1186, 20
        %v1732 = vpop.permute.xlu0 %1731
        %1733 = vrot.lane.b32.xlu0 %v1188, 20
        %v1734 = vpop.permute.xlu0 %1733
        %1735 = vrot.lane.b32.xlu0 %v1190, 20
        %v1736 = vpop.permute.xlu0 %1735
        %1737 = vrot.lane.b32.xlu0 %v1191, 20
        %v1738 = vpop.permute.xlu0 %1737
        %1739 = vrot.lane.b32.xlu0 %v1193, 20
        %v1740 = vpop.permute.xlu0 %1739
        %1741 = vrot.lane.b32.xlu0 %v1195, 20
        %v1742 = vpop.permute.xlu0 %1741
        %1743 = vrot.lane.b32.xlu0 %v1196, 20
        %v1744 = vpop.permute.xlu0 %1743
        %1745 = vrot.lane.b32.xlu0 %v1198, 20
        %v1746 = vpop.permute.xlu0 %1745
        %1747 = vrot.lane.b32.xlu0 %v1200, 20
        %v1748 = vpop.permute.xlu0 %1747
        %1749 = vrot.lane.b32.xlu0 %v1201, 20
        %v1750 = vpop.permute.xlu0 %1749
        %1751 = vrot.lane.b32.xlu0 %v1203, 20
        %v1752 = vpop.permute.xlu0 %1751
        %1753 = vrot.lane.b32.xlu0 %v1205, 20
        %v1754 = vpop.permute.xlu0 %1753
        %1755 = vrot.lane.b32.xlu0 %v1660, 20
        %v1756 = vpop.permute.xlu0 %1755
        %1757 = vrot.lane.b32.xlu0 %v1662, 20
        %v1758 = vpop.permute.xlu0 %1757
        %1759 = vrot.lane.b32.xlu0 %v1664, 20
        %v1760 = vpop.permute.xlu0 %1759
        %1812 = vrot.lane.b32.xlu0 %v820, 24
        %v1813 = vpop.permute.xlu0 %1812
        %1814 = vrot.lane.b32.xlu0 %v821, 24
        %v1815 = vpop.permute.xlu0 %1814
        %1816 = vrot.lane.b32.xlu0 %v822, 24
        %v1817 = vpop.permute.xlu0 %1816
        %1818 = vrot.lane.b32.xlu0 %v824, 24
        %v1819 = vpop.permute.xlu0 %1818
        %1820 = vrot.lane.b32.xlu0 %v825, 24
        %v1821 = vpop.permute.xlu0 %1820
        %1822 = vrot.lane.b32.xlu0 %v826, 24
        %v1823 = vpop.permute.xlu0 %1822
        %1824 = vrot.lane.b32.xlu0 %v828, 24
        %v1825 = vpop.permute.xlu0 %1824
        %1826 = vrot.lane.b32.xlu0 %v829, 24
        %v1827 = vpop.permute.xlu0 %1826
        %1828 = vrot.lane.b32.xlu0 %v830, 24
        %v1829 = vpop.permute.xlu0 %1828
        %1830 = vrot.lane.b32.xlu0 %v832, 24
        %v1831 = vpop.permute.xlu0 %1830
        %1832 = vrot.lane.b32.xlu0 %v833, 24
        %v1833 = vpop.permute.xlu0 %1832
        %1834 = vrot.lane.b32.xlu0 %v834, 24
        %v1835 = vpop.permute.xlu0 %1834
        %1836 = vrot.lane.b32.xlu0 %v836, 24
        %v1837 = vpop.permute.xlu0 %1836
        %1838 = vrot.lane.b32.xlu0 %v837, 24
        %v1839 = vpop.permute.xlu0 %1838
        %1840 = vrot.lane.b32.xlu0 %v838, 24
        %v1841 = vpop.permute.xlu0 %1840
        %1842 = vrot.lane.b32.xlu0 %v840, 24
        %v1843 = vpop.permute.xlu0 %1842
        %1844 = vrot.lane.b32.xlu0 %v841, 24
        %v1845 = vpop.permute.xlu0 %1844
        %1846 = vrot.lane.b32.xlu0 %v842, 24
        %v1847 = vpop.permute.xlu0 %1846
        %1848 = vrot.lane.b32.xlu0 %v844, 24
        %v1849 = vpop.permute.xlu0 %1848
        %1850 = vrot.lane.b32.xlu0 %v845, 24
        %v1851 = vpop.permute.xlu0 %1850
        %1852 = vrot.lane.b32.xlu0 %v846, 24
        %v1853 = vpop.permute.xlu0 %1852
        %1854 = vrot.lane.b32.xlu0 %v848, 24
        %v1855 = vpop.permute.xlu0 %1854
        %1856 = vrot.lane.b32.xlu0 %v849, 24
        %v1857 = vpop.permute.xlu0 %1856
        %1858 = vrot.lane.b32.xlu0 %v850, 24
        %v1859 = vpop.permute.xlu0 %1858
        %1860 = vrot.lane.b32.xlu0 %v852, 24
        %v1861 = vpop.permute.xlu0 %1860
        %1862 = vrot.lane.b32.xlu0 %v853, 24
        %v1863 = vpop.permute.xlu0 %1862
        %1864 = vrot.lane.b32.xlu0 %v854, 24
        %v1865 = vpop.permute.xlu0 %1864
        %1866 = vrot.lane.b32.xlu0 %v856, 24
        %v1867 = vpop.permute.xlu0 %1866
        %1868 = vrot.lane.b32.xlu0 %v857, 24
        %v1869 = vpop.permute.xlu0 %1868
        %1870 = vrot.lane.b32.xlu0 %v858, 24
        %v1871 = vpop.permute.xlu0 %1870
        %1872 = vrot.lane.b32.xlu0 %v860, 24
        %v1873 = vpop.permute.xlu0 %1872
        %1874 = vrot.lane.b32.xlu0 %v861, 24
        %v1875 = vpop.permute.xlu0 %1874
        %1876 = vrot.lane.b32.xlu0 %v862, 24
        %v1877 = vpop.permute.xlu0 %1876
        %1878 = vrot.lane.b32.xlu0 %v864, 24
        %v1879 = vpop.permute.xlu0 %1878
        %1880 = vrot.lane.b32.xlu0 %v865, 24
        %v1881 = vpop.permute.xlu0 %1880
        %1882 = vrot.lane.b32.xlu0 %v866, 24
        %v1883 = vpop.permute.xlu0 %1882
        %1884 = vrot.lane.b32.xlu0 %v868, 24
        %v1885 = vpop.permute.xlu0 %1884
        %1886 = vrot.lane.b32.xlu0 %v869, 24
        %v1887 = vpop.permute.xlu0 %1886
        %1888 = vrot.lane.b32.xlu0 %v870, 24
        %v1889 = vpop.permute.xlu0 %1888
        %1890 = vrot.lane.b32.xlu0 %v872, 24
        %v1891 = vpop.permute.xlu0 %1890
        %1892 = vrot.lane.b32.xlu0 %v873, 24
        %v1893 = vpop.permute.xlu0 %1892
        %1894 = vrot.lane.b32.xlu0 %v874, 24
        %v1895 = vpop.permute.xlu0 %1894
        %1896 = vrot.lane.b32.xlu0 %v876, 24
        %v1897 = vpop.permute.xlu0 %1896
        %1898 = vrot.lane.b32.xlu0 %v877, 24
        %v1899 = vpop.permute.xlu0 %1898
        %1900 = vrot.lane.b32.xlu0 %v878, 24
        %v1901 = vpop.permute.xlu0 %1900
        %1902 = vrot.lane.b32.xlu0 %v880, 24
        %v1903 = vpop.permute.xlu0 %1902
        %1904 = vrot.lane.b32.xlu0 %v881, 24
        %v1905 = vpop.permute.xlu0 %1904
        %1906 = vrot.lane.b32.xlu0 %v882, 24
        %v1907 = vpop.permute.xlu0 %1906
        %v1956 = vrot.slane %v881, 1
        %v1957 = vrot.slane %v882, 1
        %v1958 = vsel %vm916, %v1956, %v1957
        %1959 = vrot.lane.b32.xlu0 %v923, 28
        %v1960 = vpop.permute.xlu0 %1959
        %1961 = vrot.lane.b32.xlu0 %v925, 28
        %v1962 = vpop.permute.xlu0 %1961
        %1963 = vrot.lane.b32.xlu0 %v924, 28
        %v1964 = vpop.permute.xlu0 %1963
        %1965 = vrot.lane.b32.xlu0 %v926, 28
        %v1966 = vpop.permute.xlu0 %1965
        %1967 = vrot.lane.b32.xlu0 %v928, 28
        %v1968 = vpop.permute.xlu0 %1967
        %1969 = vrot.lane.b32.xlu0 %v927, 28
        %v1970 = vpop.permute.xlu0 %1969
        %1971 = vrot.lane.b32.xlu0 %v929, 28
        %v1972 = vpop.permute.xlu0 %1971
        %1973 = vrot.lane.b32.xlu0 %v931, 28
        %v1974 = vpop.permute.xlu0 %1973
        %1975 = vrot.lane.b32.xlu0 %v930, 28
        %v1976 = vpop.permute.xlu0 %1975
        %1977 = vrot.lane.b32.xlu0 %v932, 28
        %v1978 = vpop.permute.xlu0 %1977
        %1979 = vrot.lane.b32.xlu0 %v934, 28
        %v1980 = vpop.permute.xlu0 %1979
        %1981 = vrot.lane.b32.xlu0 %v933, 28
        %v1982 = vpop.permute.xlu0 %1981
        %1983 = vrot.lane.b32.xlu0 %v935, 28
        %v1984 = vpop.permute.xlu0 %1983
        %1985 = vrot.lane.b32.xlu0 %v937, 28
        %v1986 = vpop.permute.xlu0 %1985
        %1987 = vrot.lane.b32.xlu0 %v936, 28
        %v1988 = vpop.permute.xlu0 %1987
        %1989 = vrot.lane.b32.xlu0 %v938, 28
        %v1990 = vpop.permute.xlu0 %1989
        %1991 = vrot.lane.b32.xlu0 %v940, 28
        %v1992 = vpop.permute.xlu0 %1991
        %1993 = vrot.lane.b32.xlu0 %v939, 28
        %v1994 = vpop.permute.xlu0 %1993
        %1995 = vrot.lane.b32.xlu0 %v941, 28
        %v1996 = vpop.permute.xlu0 %1995
        %1997 = vrot.lane.b32.xlu0 %v943, 28
        %v1998 = vpop.permute.xlu0 %1997
        %1999 = vrot.lane.b32.xlu0 %v942, 28
        %v2000 = vpop.permute.xlu0 %1999
        %2001 = vrot.lane.b32.xlu0 %v944, 28
        %v2002 = vpop.permute.xlu0 %2001
        %2003 = vrot.lane.b32.xlu0 %v946, 28
        %v2004 = vpop.permute.xlu0 %2003
        %2005 = vrot.lane.b32.xlu0 %v945, 28
        %v2006 = vpop.permute.xlu0 %2005
        %2007 = vrot.lane.b32.xlu0 %v947, 28
        %v2008 = vpop.permute.xlu0 %2007
        %2009 = vrot.lane.b32.xlu0 %v949, 28
        %v2010 = vpop.permute.xlu0 %2009
        %2011 = vrot.lane.b32.xlu0 %v948, 28
        %v2012 = vpop.permute.xlu0 %2011
        %2013 = vrot.lane.b32.xlu0 %v950, 28
        %v2014 = vpop.permute.xlu0 %2013
        %2015 = vrot.lane.b32.xlu0 %v952, 28
        %v2016 = vpop.permute.xlu0 %2015
        %2017 = vrot.lane.b32.xlu0 %v951, 28
        %v2018 = vpop.permute.xlu0 %2017
        %2019 = vrot.lane.b32.xlu0 %v953, 28
        %v2020 = vpop.permute.xlu0 %2019
        %2021 = vrot.lane.b32.xlu0 %v955, 28
        %v2022 = vpop.permute.xlu0 %2021
        %2023 = vrot.lane.b32.xlu0 %v954, 28
        %v2024 = vpop.permute.xlu0 %2023
        %2025 = vrot.lane.b32.xlu0 %v956, 28
        %v2026 = vpop.permute.xlu0 %2025
        %2027 = vrot.lane.b32.xlu0 %v958, 28
        %v2028 = vpop.permute.xlu0 %2027
        %2029 = vrot.lane.b32.xlu0 %v957, 28
        %v2030 = vpop.permute.xlu0 %2029
        %2031 = vrot.lane.b32.xlu0 %v959, 28
        %v2032 = vpop.permute.xlu0 %2031
        %2033 = vrot.lane.b32.xlu0 %v961, 28
        %v2034 = vpop.permute.xlu0 %2033
        %2035 = vrot.lane.b32.xlu0 %v960, 28
        %v2036 = vpop.permute.xlu0 %2035
        %2037 = vrot.lane.b32.xlu0 %v962, 28
        %v2038 = vpop.permute.xlu0 %2037
        %2039 = vrot.lane.b32.xlu0 %v964, 28
        %v2040 = vpop.permute.xlu0 %2039
        %2041 = vrot.lane.b32.xlu0 %v963, 28
        %v2042 = vpop.permute.xlu0 %2041
        %2043 = vrot.lane.b32.xlu0 %v1512, 28
        %v2044 = vpop.permute.xlu0 %2043
        %2045 = vrot.lane.b32.xlu0 %v1514, 28
        %v2046 = vpop.permute.xlu0 %2045
        %2047 = vrot.lane.b32.xlu0 %v1513, 28
        %v2048 = vpop.permute.xlu0 %2047
        %2049 = vrot.lane.b32.xlu0 %v1956, 28
        %v2050 = vpop.permute.xlu0 %2049
        %2051 = vrot.lane.b32.xlu0 %v1958, 28
        %v2052 = vpop.permute.xlu0 %2051
        %2053 = vrot.lane.b32.xlu0 %v1957, 28
        %v2054 = vpop.permute.xlu0 %2053
        %v2104 = vrot.slane %v881, 2
        %v2105 = vrot.slane %v882, 2
        %v2106 = vsel %vm1125, %v2104, %v2105
        %v2107 = vrot.slane %v883, 2
        %v2108 = vsel %vm1125, %v2105, %v2107
        %2109 = vrot.lane.b32.xlu0 %v1136, 32
        %v2110 = vpop.permute.xlu0 %2109
        %2111 = vrot.lane.b32.xlu0 %v1138, 32
        %v2112 = vpop.permute.xlu0 %2111
        %2113 = vrot.lane.b32.xlu0 %v1140, 32
        %v2114 = vpop.permute.xlu0 %2113
        %2115 = vrot.lane.b32.xlu0 %v1141, 32
        %v2116 = vpop.permute.xlu0 %2115
        %2117 = vrot.lane.b32.xlu0 %v1143, 32
        %v2118 = vpop.permute.xlu0 %2117
        %2119 = vrot.lane.b32.xlu0 %v1145, 32
        %v2120 = vpop.permute.xlu0 %2119
        %2121 = vrot.lane.b32.xlu0 %v1146, 32
        %v2122 = vpop.permute.xlu0 %2121
        %2123 = vrot.lane.b32.xlu0 %v1148, 32
        %v2124 = vpop.permute.xlu0 %2123
        %2125 = vrot.lane.b32.xlu0 %v1150, 32
        %v2126 = vpop.permute.xlu0 %2125
        %2127 = vrot.lane.b32.xlu0 %v1151, 32
        %v2128 = vpop.permute.xlu0 %2127
        %2129 = vrot.lane.b32.xlu0 %v1153, 32
        %v2130 = vpop.permute.xlu0 %2129
        %2131 = vrot.lane.b32.xlu0 %v1155, 32
        %v2132 = vpop.permute.xlu0 %2131
        %2133 = vrot.lane.b32.xlu0 %v1156, 32
        %v2134 = vpop.permute.xlu0 %2133
        %2135 = vrot.lane.b32.xlu0 %v1158, 32
        %v2136 = vpop.permute.xlu0 %2135
        %2137 = vrot.lane.b32.xlu0 %v1160, 32
        %v2138 = vpop.permute.xlu0 %2137
        %2139 = vrot.lane.b32.xlu0 %v1161, 32
        %v2140 = vpop.permute.xlu0 %2139
        %2141 = vrot.lane.b32.xlu0 %v1163, 32
        %v2142 = vpop.permute.xlu0 %2141
        %2143 = vrot.lane.b32.xlu0 %v1165, 32
        %v2144 = vpop.permute.xlu0 %2143
        %2145 = vrot.lane.b32.xlu0 %v1166, 32
        %v2146 = vpop.permute.xlu0 %2145
        %2147 = vrot.lane.b32.xlu0 %v1168, 32
        %v2148 = vpop.permute.xlu0 %2147
        %2149 = vrot.lane.b32.xlu0 %v1170, 32
        %v2150 = vpop.permute.xlu0 %2149
        %2151 = vrot.lane.b32.xlu0 %v1171, 32
        %v2152 = vpop.permute.xlu0 %2151
        %2153 = vrot.lane.b32.xlu0 %v1173, 32
        %v2154 = vpop.permute.xlu0 %2153
        %2155 = vrot.lane.b32.xlu0 %v1175, 32
        %v2156 = vpop.permute.xlu0 %2155
        %2157 = vrot.lane.b32.xlu0 %v1176, 32
        %v2158 = vpop.permute.xlu0 %2157
        %2159 = vrot.lane.b32.xlu0 %v1178, 32
        %v2160 = vpop.permute.xlu0 %2159
        %2161 = vrot.lane.b32.xlu0 %v1180, 32
        %v2162 = vpop.permute.xlu0 %2161
        %2163 = vrot.lane.b32.xlu0 %v1181, 32
        %v2164 = vpop.permute.xlu0 %2163
        %2165 = vrot.lane.b32.xlu0 %v1183, 32
        %v2166 = vpop.permute.xlu0 %2165
        %2167 = vrot.lane.b32.xlu0 %v1185, 32
        %v2168 = vpop.permute.xlu0 %2167
        %2169 = vrot.lane.b32.xlu0 %v1186, 32
        %v2170 = vpop.permute.xlu0 %2169
        %2171 = vrot.lane.b32.xlu0 %v1188, 32
        %v2172 = vpop.permute.xlu0 %2171
        %2173 = vrot.lane.b32.xlu0 %v1190, 32
        %v2174 = vpop.permute.xlu0 %2173
        %2175 = vrot.lane.b32.xlu0 %v1191, 32
        %v2176 = vpop.permute.xlu0 %2175
        %2177 = vrot.lane.b32.xlu0 %v1193, 32
        %v2178 = vpop.permute.xlu0 %2177
        %2179 = vrot.lane.b32.xlu0 %v1195, 32
        %v2180 = vpop.permute.xlu0 %2179
        %2181 = vrot.lane.b32.xlu0 %v1196, 32
        %v2182 = vpop.permute.xlu0 %2181
        %2183 = vrot.lane.b32.xlu0 %v1198, 32
        %v2184 = vpop.permute.xlu0 %2183
        %2185 = vrot.lane.b32.xlu0 %v1200, 32
        %v2186 = vpop.permute.xlu0 %2185
        %2187 = vrot.lane.b32.xlu0 %v1201, 32
        %v2188 = vpop.permute.xlu0 %2187
        %2189 = vrot.lane.b32.xlu0 %v1203, 32
        %v2190 = vpop.permute.xlu0 %2189
        %2191 = vrot.lane.b32.xlu0 %v1205, 32
        %v2192 = vpop.permute.xlu0 %2191
        %2193 = vrot.lane.b32.xlu0 %v1660, 32
        %v2194 = vpop.permute.xlu0 %2193
        %2195 = vrot.lane.b32.xlu0 %v1662, 32
        %v2196 = vpop.permute.xlu0 %2195
        %2197 = vrot.lane.b32.xlu0 %v1664, 32
        %v2198 = vpop.permute.xlu0 %2197
        %2199 = vrot.lane.b32.xlu0 %v2104, 32
        %v2200 = vpop.permute.xlu0 %2199
        %2201 = vrot.lane.b32.xlu0 %v2106, 32
        %v2202 = vpop.permute.xlu0 %2201
        %2203 = vrot.lane.b32.xlu0 %v2108, 32
        %v2204 = vpop.permute.xlu0 %2203
        %v2253 = vsel %vm705, %v812, %v966
        %v2254 = vsel %vm705, %v813, %v968
        %v2255 = vsel %vm705, %v814, %v970
        %v2256 = vsel %vm705, %v816, %v972
        %v2257 = vsel %vm705, %v817, %v974
        %v2258 = vsel %vm705, %v818, %v976
        %v2259 = vsel %vm705, %v820, %v978
        %v2260 = vsel %vm705, %v821, %v980
        %v2261 = vsel %vm705, %v822, %v982
        %v2262 = vsel %vm705, %v824, %v984
        %v2263 = vsel %vm705, %v825, %v986
        %v2264 = vsel %vm705, %v826, %v988
        %v2265 = vsel %vm705, %v828, %v990
        %v2266 = vsel %vm705, %v829, %v992
        %v2267 = vsel %vm705, %v830, %v994
        %v2268 = vsel %vm705, %v832, %v996
        %v2269 = vsel %vm705, %v833, %v998
        %v2270 = vsel %vm705, %v834, %v1000
        %v2271 = vsel %vm705, %v836, %v1002
        %v2272 = vsel %vm705, %v837, %v1004
        %v2273 = vsel %vm705, %v838, %v1006
        %v2274 = vsel %vm705, %v840, %v1008
        %v2275 = vsel %vm705, %v841, %v1010
        %v2276 = vsel %vm705, %v842, %v1012
        %v2277 = vsel %vm705, %v844, %v1014
        %v2278 = vsel %vm705, %v845, %v1016
        %v2279 = vsel %vm705, %v846, %v1018
        %v2280 = vsel %vm705, %v848, %v1020
        %v2281 = vsel %vm705, %v849, %v1022
        %v2282 = vsel %vm705, %v850, %v1024
        %v2283 = vsel %vm705, %v852, %v1026
        %v2284 = vsel %vm705, %v853, %v1028
        %v2285 = vsel %vm705, %v854, %v1030
        %v2286 = vsel %vm705, %v856, %v1032
        %v2287 = vsel %vm705, %v857, %v1034
        %v2288 = vsel %vm705, %v858, %v1036
        %v2289 = vsel %vm705, %v860, %v1038
        %v2290 = vsel %vm705, %v861, %v1040
        %v2291 = vsel %vm705, %v862, %v1042
        %v2292 = vsel %vm705, %v864, %v1044
        %v2293 = vsel %vm705, %v865, %v1046
        %v2294 = vsel %vm705, %v866, %v1048
        %v2295 = vsel %vm705, %v868, %v1050
        %v2296 = vsel %vm705, %v869, %v1052
        %v2297 = vsel %vm705, %v870, %v1054
        %v2298 = vsel %vm705, %v872, %v1056
        %v2299 = vsel %vm705, %v873, %v1058
        %v2300 = vsel %vm705, %v874, %v1060
        %v2301 = vsel %vm391, %v2253, %v1207
        %v2302 = vsel %vm391, %v2254, %v1209
        %v2303 = vsel %vm391, %v2255, %v1211
        %v2304 = vsel %vm391, %v2256, %v1213
        %v2305 = vsel %vm391, %v2257, %v1215
        %v2306 = vsel %vm391, %v2258, %v1217
        %v2307 = vsel %vm391, %v2259, %v1219
        %v2308 = vsel %vm391, %v2260, %v1221
        %v2309 = vsel %vm391, %v2261, %v1223
        %v2310 = vsel %vm391, %v2262, %v1225
        %v2311 = vsel %vm391, %v2263, %v1227
        %v2312 = vsel %vm391, %v2264, %v1229
        %v2313 = vsel %vm391, %v2265, %v1231
        %v2314 = vsel %vm391, %v2266, %v1233
        %v2315 = vsel %vm391, %v2267, %v1235
        %v2316 = vsel %vm391, %v2268, %v1237
        %v2317 = vsel %vm391, %v2269, %v1239
        %v2318 = vsel %vm391, %v2270, %v1241
        %v2319 = vsel %vm391, %v2271, %v1243
        %v2320 = vsel %vm391, %v2272, %v1245
        %v2321 = vsel %vm391, %v2273, %v1247
        %v2322 = vsel %vm391, %v2274, %v1249
        %v2323 = vsel %vm391, %v2275, %v1251
        %v2324 = vsel %vm391, %v2276, %v1253
        %v2325 = vsel %vm391, %v2277, %v1255
        %v2326 = vsel %vm391, %v2278, %v1257
        %v2327 = vsel %vm391, %v2279, %v1259
        %v2328 = vsel %vm391, %v2280, %v1261
        %v2329 = vsel %vm391, %v2281, %v1263
        %v2330 = vsel %vm391, %v2282, %v1265
        %v2331 = vsel %vm391, %v2283, %v1267
        %v2332 = vsel %vm391, %v2284, %v1269
        %v2333 = vsel %vm391, %v2285, %v1271
        %v2334 = vsel %vm391, %v2286, %v1273
        %v2335 = vsel %vm391, %v2287, %v1275
        %v2336 = vsel %vm391, %v2288, %v1277
        %v2337 = vsel %vm391, %v2289, %v1279
        %v2338 = vsel %vm391, %v2290, %v1281
        %v2339 = vsel %vm391, %v2291, %v1283
        %v2340 = vsel %vm391, %v2292, %v1285
        %v2341 = vsel %vm391, %v2293, %v1287
        %v2342 = vsel %vm391, %v2294, %v1289
        %v2343 = vsel %vm391, %v2295, %v1291
        %v2344 = vsel %vm391, %v2296, %v1293
        %v2345 = vsel %vm391, %v2297, %v1295
        %v2346 = vsel %vm391, %v2298, %v1297
        %v2347 = vsel %vm391, %v2299, %v1299
        %v2348 = vsel %vm391, %v2300, %v1301
        %vm2349 = vcmask 97280
        %v2350 = vsel %vm2349, %v2301, %v1369
        %v2351 = vsel %vm2349, %v2302, %v1371
        %v2352 = vsel %vm2349, %v2303, %v1373
        %v2353 = vsel %vm2349, %v2304, %v1375
        %v2354 = vsel %vm2349, %v2305, %v1377
        %v2355 = vsel %vm2349, %v2306, %v1379
        %v2356 = vsel %vm2349, %v2307, %v1381
        %v2357 = vsel %vm2349, %v2308, %v1383
        %v2358 = vsel %vm2349, %v2309, %v1385
        %v2359 = vsel %vm2349, %v2310, %v1387
        %v2360 = vsel %vm2349, %v2311, %v1389
        %v2361 = vsel %vm2349, %v2312, %v1391
        %v2362 = vsel %vm2349, %v2313, %v1393
        %v2363 = vsel %vm2349, %v2314, %v1395
        %v2364 = vsel %vm2349, %v2315, %v1397
        %v2365 = vsel %vm2349, %v2316, %v1399
        %v2366 = vsel %vm2349, %v2317, %v1401
        %v2367 = vsel %vm2349, %v2318, %v1403
        %v2368 = vsel %vm2349, %v2319, %v1405
        %v2369 = vsel %vm2349, %v2320, %v1407
        %v2370 = vsel %vm2349, %v2321, %v1409
        %v2371 = vsel %vm2349, %v2322, %v1411
        %v2372 = vsel %vm2349, %v2323, %v1413
        %v2373 = vsel %vm2349, %v2324, %v1415
        %v2374 = vsel %vm2349, %v2325, %v1417
        %v2375 = vsel %vm2349, %v2326, %v1419
        %v2376 = vsel %vm2349, %v2327, %v1421
        %v2377 = vsel %vm2349, %v2328, %v1423
        %v2378 = vsel %vm2349, %v2329, %v1425
        %v2379 = vsel %vm2349, %v2330, %v1427
        %v2380 = vsel %vm2349, %v2331, %v1429
        %v2381 = vsel %vm2349, %v2332, %v1431
        %v2382 = vsel %vm2349, %v2333, %v1433
        %v2383 = vsel %vm2349, %v2334, %v1435
        %v2384 = vsel %vm2349, %v2335, %v1437
        %v2385 = vsel %vm2349, %v2336, %v1439
        %v2386 = vsel %vm2349, %v2337, %v1441
        %v2387 = vsel %vm2349, %v2338, %v1443
        %v2388 = vsel %vm2349, %v2339, %v1445
        %v2389 = vsel %vm2349, %v2340, %v1447
        %v2390 = vsel %vm2349, %v2341, %v1449
        %v2391 = vsel %vm2349, %v2342, %v1451
        %v2392 = vsel %vm2349, %v2343, %v1453
        %v2393 = vsel %vm2349, %v2344, %v1455
        %v2394 = vsel %vm2349, %v2345, %v1457
        %v2395 = vsel %vm2349, %v2346, %v1459
        %v2396 = vsel %vm2349, %v2347, %v1461
        %v2397 = vsel %vm2349, %v2348, %v1463
        %vm2398 = vcmask 130048
        %v2399 = vsel %vm2398, %v2350, %v1516
        %v2400 = vsel %vm2398, %v2351, %v1518
        %v2401 = vsel %vm2398, %v2352, %v1520
        %v2402 = vsel %vm2398, %v2353, %v1522
        %v2403 = vsel %vm2398, %v2354, %v1524
        %v2404 = vsel %vm2398, %v2355, %v1526
        %v2405 = vsel %vm2398, %v2356, %v1528
        %v2406 = vsel %vm2398, %v2357, %v1530
        %v2407 = vsel %vm2398, %v2358, %v1532
        %v2408 = vsel %vm2398, %v2359, %v1534
        %v2409 = vsel %vm2398, %v2360, %v1536
        %v2410 = vsel %vm2398, %v2361, %v1538
        %v2411 = vsel %vm2398, %v2362, %v1540
        %v2412 = vsel %vm2398, %v2363, %v1542
        %v2413 = vsel %vm2398, %v2364, %v1544
        %v2414 = vsel %vm2398, %v2365, %v1546
        %v2415 = vsel %vm2398, %v2366, %v1548
        %v2416 = vsel %vm2398, %v2367, %v1550
        %v2417 = vsel %vm2398, %v2368, %v1552
        %v2418 = vsel %vm2398, %v2369, %v1554
        %v2419 = vsel %vm2398, %v2370, %v1556
        %v2420 = vsel %vm2398, %v2371, %v1558
        %v2421 = vsel %vm2398, %v2372, %v1560
        %v2422 = vsel %vm2398, %v2373, %v1562
        %v2423 = vsel %vm2398, %v2374, %v1564
        %v2424 = vsel %vm2398, %v2375, %v1566
        %v2425 = vsel %vm2398, %v2376, %v1568
        %v2426 = vsel %vm2398, %v2377, %v1570
        %v2427 = vsel %vm2398, %v2378, %v1572
        %v2428 = vsel %vm2398, %v2379, %v1574
        %v2429 = vsel %vm2398, %v2380, %v1576
        %v2430 = vsel %vm2398, %v2381, %v1578
        %v2431 = vsel %vm2398, %v2382, %v1580
        %v2432 = vsel %vm2398, %v2383, %v1582
        %v2433 = vsel %vm2398, %v2384, %v1584
        %v2434 = vsel %vm2398, %v2385, %v1586
        %v2435 = vsel %vm2398, %v2386, %v1588
        %v2436 = vsel %vm2398, %v2387, %v1590
        %v2437 = vsel %vm2398, %v2388, %v1592
        %v2438 = vsel %vm2398, %v2389, %v1594
        %v2439 = vsel %vm2398, %v2390, %v1596
        %v2440 = vsel %vm2398, %v2391, %v1598
        %v2441 = vsel %vm2398, %v2392, %v1600
        %v2442 = vsel %vm2398, %v2393, %v1602
        %v2443 = vsel %vm2398, %v2394, %v1604
        %v2444 = vsel %vm2398, %v2395, %v1606
        %v2445 = vsel %vm2398, %v2396, %v1608
        %v2446 = vsel %vm2398, %v2397, %v1610
        %vm2447 = vcmask 162816
        %v2448 = vsel %vm2447, %v2399, %v1666
        %v2449 = vsel %vm2447, %v2400, %v1668
        %v2450 = vsel %vm2447, %v2401, %v1670
        %v2451 = vsel %vm2447, %v2402, %v1672
        %v2452 = vsel %vm2447, %v2403, %v1674
        %v2453 = vsel %vm2447, %v2404, %v1676
        %v2454 = vsel %vm2447, %v2405, %v1678
        %v2455 = vsel %vm2447, %v2406, %v1680
        %v2456 = vsel %vm2447, %v2407, %v1682
        %v2457 = vsel %vm2447, %v2408, %v1684
        %v2458 = vsel %vm2447, %v2409, %v1686
        %v2459 = vsel %vm2447, %v2410, %v1688
        %v2460 = vsel %vm2447, %v2411, %v1690
        %v2461 = vsel %vm2447, %v2412, %v1692
        %v2462 = vsel %vm2447, %v2413, %v1694
        %v2463 = vsel %vm2447, %v2414, %v1696
        %v2464 = vsel %vm2447, %v2415, %v1698
        %v2465 = vsel %vm2447, %v2416, %v1700
        %v2466 = vsel %vm2447, %v2417, %v1702
        %v2467 = vsel %vm2447, %v2418, %v1704
        %v2468 = vsel %vm2447, %v2419, %v1706
        %v2469 = vsel %vm2447, %v2420, %v1708
        %v2470 = vsel %vm2447, %v2421, %v1710
        %v2471 = vsel %vm2447, %v2422, %v1712
        %v2472 = vsel %vm2447, %v2423, %v1714
        %v2473 = vsel %vm2447, %v2424, %v1716
        %v2474 = vsel %vm2447, %v2425, %v1718
        %v2475 = vsel %vm2447, %v2426, %v1720
        %v2476 = vsel %vm2447, %v2427, %v1722
        %v2477 = vsel %vm2447, %v2428, %v1724
        %v2478 = vsel %vm2447, %v2429, %v1726
        %v2479 = vsel %vm2447, %v2430, %v1728
        %v2480 = vsel %vm2447, %v2431, %v1730
        %v2481 = vsel %vm2447, %v2432, %v1732
        %v2482 = vsel %vm2447, %v2433, %v1734
        %v2483 = vsel %vm2447, %v2434, %v1736
        %v2484 = vsel %vm2447, %v2435, %v1738
        %v2485 = vsel %vm2447, %v2436, %v1740
        %v2486 = vsel %vm2447, %v2437, %v1742
        %v2487 = vsel %vm2447, %v2438, %v1744
        %v2488 = vsel %vm2447, %v2439, %v1746
        %v2489 = vsel %vm2447, %v2440, %v1748
        %v2490 = vsel %vm2447, %v2441, %v1750
        %v2491 = vsel %vm2447, %v2442, %v1752
        %v2492 = vsel %vm2447, %v2443, %v1754
        %v2493 = vsel %vm2447, %v2444, %v1756
        %v2494 = vsel %vm2447, %v2445, %v1758
        %v2495 = vsel %vm2447, %v2446, %v1760
        %vm2496 = vcmask 195584
        %v2497 = vsel %vm2496, %v2448, %v1813
        %v2498 = vsel %vm2496, %v2449, %v1815
        %v2499 = vsel %vm2496, %v2450, %v1817
        %v2500 = vsel %vm2496, %v2451, %v1819
        %v2501 = vsel %vm2496, %v2452, %v1821
        %v2502 = vsel %vm2496, %v2453, %v1823
        %v2503 = vsel %vm2496, %v2454, %v1825
        %v2504 = vsel %vm2496, %v2455, %v1827
        %v2505 = vsel %vm2496, %v2456, %v1829
        %v2506 = vsel %vm2496, %v2457, %v1831
        %v2507 = vsel %vm2496, %v2458, %v1833
        %v2508 = vsel %vm2496, %v2459, %v1835
        %v2509 = vsel %vm2496, %v2460, %v1837
        %v2510 = vsel %vm2496, %v2461, %v1839
        %v2511 = vsel %vm2496, %v2462, %v1841
        %v2512 = vsel %vm2496, %v2463, %v1843
        %v2513 = vsel %vm2496, %v2464, %v1845
        %v2514 = vsel %vm2496, %v2465, %v1847
        %v2515 = vsel %vm2496, %v2466, %v1849
        %v2516 = vsel %vm2496, %v2467, %v1851
        %v2517 = vsel %vm2496, %v2468, %v1853
        %v2518 = vsel %vm2496, %v2469, %v1855
        %v2519 = vsel %vm2496, %v2470, %v1857
        %v2520 = vsel %vm2496, %v2471, %v1859
        %v2521 = vsel %vm2496, %v2472, %v1861
        %v2522 = vsel %vm2496, %v2473, %v1863
        %v2523 = vsel %vm2496, %v2474, %v1865
        %v2524 = vsel %vm2496, %v2475, %v1867
        %v2525 = vsel %vm2496, %v2476, %v1869
        %v2526 = vsel %vm2496, %v2477, %v1871
        %v2527 = vsel %vm2496, %v2478, %v1873
        %v2528 = vsel %vm2496, %v2479, %v1875
        %v2529 = vsel %vm2496, %v2480, %v1877
        %v2530 = vsel %vm2496, %v2481, %v1879
        %v2531 = vsel %vm2496, %v2482, %v1881
        %v2532 = vsel %vm2496, %v2483, %v1883
        %v2533 = vsel %vm2496, %v2484, %v1885
        %v2534 = vsel %vm2496, %v2485, %v1887
        %v2535 = vsel %vm2496, %v2486, %v1889
        %v2536 = vsel %vm2496, %v2487, %v1891
        %v2537 = vsel %vm2496, %v2488, %v1893
        %v2538 = vsel %vm2496, %v2489, %v1895
        %v2539 = vsel %vm2496, %v2490, %v1897
        %v2540 = vsel %vm2496, %v2491, %v1899
        %v2541 = vsel %vm2496, %v2492, %v1901
        %v2542 = vsel %vm2496, %v2493, %v1903
        %v2543 = vsel %vm2496, %v2494, %v1905
        %v2544 = vsel %vm2496, %v2495, %v1907
        %vm2545 = vcmask 228352
        %v2546 = vsel %vm2545, %v2497, %v1960
        %v2547 = vsel %vm2545, %v2498, %v1962
        %v2548 = vsel %vm2545, %v2499, %v1964
        %v2549 = vsel %vm2545, %v2500, %v1966
        %v2550 = vsel %vm2545, %v2501, %v1968
        %v2551 = vsel %vm2545, %v2502, %v1970
        %v2552 = vsel %vm2545, %v2503, %v1972
        %v2553 = vsel %vm2545, %v2504, %v1974
        %v2554 = vsel %vm2545, %v2505, %v1976
        %v2555 = vsel %vm2545, %v2506, %v1978
        %v2556 = vsel %vm2545, %v2507, %v1980
        %v2557 = vsel %vm2545, %v2508, %v1982
        %v2558 = vsel %vm2545, %v2509, %v1984
        %v2559 = vsel %vm2545, %v2510, %v1986
        %v2560 = vsel %vm2545, %v2511, %v1988
        %v2561 = vsel %vm2545, %v2512, %v1990
        %v2562 = vsel %vm2545, %v2513, %v1992
        %v2563 = vsel %vm2545, %v2514, %v1994
        %v2564 = vsel %vm2545, %v2515, %v1996
        %v2565 = vsel %vm2545, %v2516, %v1998
        %v2566 = vsel %vm2545, %v2517, %v2000
        %v2567 = vsel %vm2545, %v2518, %v2002
        %v2568 = vsel %vm2545, %v2519, %v2004
        %v2569 = vsel %vm2545, %v2520, %v2006
        %v2570 = vsel %vm2545, %v2521, %v2008
        %v2571 = vsel %vm2545, %v2522, %v2010
        %v2572 = vsel %vm2545, %v2523, %v2012
        %v2573 = vsel %vm2545, %v2524, %v2014
        %v2574 = vsel %vm2545, %v2525, %v2016
        %v2575 = vsel %vm2545, %v2526, %v2018
        %v2576 = vsel %vm2545, %v2527, %v2020
        %v2577 = vsel %vm2545, %v2528, %v2022
        %v2578 = vsel %vm2545, %v2529, %v2024
        %v2579 = vsel %vm2545, %v2530, %v2026
        %v2580 = vsel %vm2545, %v2531, %v2028
        %v2581 = vsel %vm2545, %v2532, %v2030
        %v2582 = vsel %vm2545, %v2533, %v2032
        %v2583 = vsel %vm2545, %v2534, %v2034
        %v2584 = vsel %vm2545, %v2535, %v2036
        %v2585 = vsel %vm2545, %v2536, %v2038
        %v2586 = vsel %vm2545, %v2537, %v2040
        %v2587 = vsel %vm2545, %v2538, %v2042
        %v2588 = vsel %vm2545, %v2539, %v2044
        %v2589 = vsel %vm2545, %v2540, %v2046
        %v2590 = vsel %vm2545, %v2541, %v2048
        %v2591 = vsel %vm2545, %v2542, %v2050
        %v2592 = vsel %vm2545, %v2543, %v2052
        %v2593 = vsel %vm2545, %v2544, %v2054
        %vm2594 = vcmask 261120
        %v2595 = vsel %vm2594, %v2546, %v2110
        %v2596 = vsel %vm2594, %v2547, %v2112
        %v2597 = vsel %vm2594, %v2548, %v2114
        %v2598 = vsel %vm2594, %v2549, %v2116
        %v2599 = vsel %vm2594, %v2550, %v2118
        %v2600 = vsel %vm2594, %v2551, %v2120
        %v2601 = vsel %vm2594, %v2552, %v2122
        %v2602 = vsel %vm2594, %v2553, %v2124
        %v2603 = vsel %vm2594, %v2554, %v2126
        %v2604 = vsel %vm2594, %v2555, %v2128
        %v2605 = vsel %vm2594, %v2556, %v2130
        %v2606 = vsel %vm2594, %v2557, %v2132
        %v2607 = vsel %vm2594, %v2558, %v2134
        %v2608 = vsel %vm2594, %v2559, %v2136
        %v2609 = vsel %vm2594, %v2560, %v2138
        %v2610 = vsel %vm2594, %v2561, %v2140
        %v2611 = vsel %vm2594, %v2562, %v2142
        %v2612 = vsel %vm2594, %v2563, %v2144
        %v2613 = vsel %vm2594, %v2564, %v2146
        %v2614 = vsel %vm2594, %v2565, %v2148
        %v2615 = vsel %vm2594, %v2566, %v2150
        %v2616 = vsel %vm2594, %v2567, %v2152
        %v2617 = vsel %vm2594, %v2568, %v2154
        %v2618 = vsel %vm2594, %v2569, %v2156
        %v2619 = vsel %vm2594, %v2570, %v2158
        %v2620 = vsel %vm2594, %v2571, %v2160
        %v2621 = vsel %vm2594, %v2572, %v2162
        %v2622 = vsel %vm2594, %v2573, %v2164
        %v2623 = vsel %vm2594, %v2574, %v2166
        %v2624 = vsel %vm2594, %v2575, %v2168
        %v2625 = vsel %vm2594, %v2576, %v2170
        %v2626 = vsel %vm2594, %v2577, %v2172
        %v2627 = vsel %vm2594, %v2578, %v2174
        %v2628 = vsel %vm2594, %v2579, %v2176
        %v2629 = vsel %vm2594, %v2580, %v2178
        %v2630 = vsel %vm2594, %v2581, %v2180
        %v2631 = vsel %vm2594, %v2582, %v2182
        %v2632 = vsel %vm2594, %v2583, %v2184
        %v2633 = vsel %vm2594, %v2584, %v2186
        %v2634 = vsel %vm2594, %v2585, %v2188
        %v2635 = vsel %vm2594, %v2586, %v2190
        %v2636 = vsel %vm2594, %v2587, %v2192
        %v2637 = vsel %vm2594, %v2588, %v2194
        %v2638 = vsel %vm2594, %v2589, %v2196
        %v2639 = vsel %vm2594, %v2590, %v2198
        %v2640 = vsel %vm2594, %v2591, %v2200
        %v2641 = vsel %vm2594, %v2592, %v2202
        %v2642 = vsel %vm2594, %v2593, %v2204
        %vm2691 = vcmask 1040384
        %v2692 = vrot.slane %v2595, 7
        %v2693 = vrot.slane %v2596, 7
        %v2694 = vsel %vm2691, %v2692, %v2693
        %v2695 = vrot.slane %v2597, 7
        %v2696 = vsel %vm2691, %v2693, %v2695
        %v2697 = vrot.slane %v2598, 7
        %v2698 = vrot.slane %v2599, 7
        %v2699 = vsel %vm2691, %v2697, %v2698
        %v2700 = vrot.slane %v2600, 7
        %v2701 = vsel %vm2691, %v2698, %v2700
        %v2702 = vrot.slane %v2601, 7
        %v2703 = vrot.slane %v2602, 7
        %v2704 = vsel %vm2691, %v2702, %v2703
        %v2705 = vrot.slane %v2603, 7
        %v2706 = vsel %vm2691, %v2703, %v2705
        %v2707 = vrot.slane %v2604, 7
        %v2708 = vrot.slane %v2605, 7
        %v2709 = vsel %vm2691, %v2707, %v2708
        %v2710 = vrot.slane %v2606, 7
        %v2711 = vsel %vm2691, %v2708, %v2710
        %v2712 = vrot.slane %v2607, 7
        %v2713 = vrot.slane %v2608, 7
        %v2714 = vsel %vm2691, %v2712, %v2713
        %v2715 = vrot.slane %v2609, 7
        %v2716 = vsel %vm2691, %v2713, %v2715
        %v2717 = vrot.slane %v2610, 7
        %v2718 = vrot.slane %v2611, 7
        %v2719 = vsel %vm2691, %v2717, %v2718
        %v2720 = vrot.slane %v2612, 7
        %v2721 = vsel %vm2691, %v2718, %v2720
        %v2722 = vrot.slane %v2613, 7
        %v2723 = vrot.slane %v2614, 7
        %v2724 = vsel %vm2691, %v2722, %v2723
        %v2725 = vrot.slane %v2615, 7
        %v2726 = vsel %vm2691, %v2723, %v2725
        %v2727 = vrot.slane %v2616, 7
        %v2728 = vrot.slane %v2617, 7
        %v2729 = vsel %vm2691, %v2727, %v2728
        %v2730 = vrot.slane %v2618, 7
        %v2731 = vsel %vm2691, %v2728, %v2730
        %v2732 = vrot.slane %v2619, 7
        %v2733 = vrot.slane %v2620, 7
        %v2734 = vsel %vm2691, %v2732, %v2733
        %v2735 = vrot.slane %v2621, 7
        %v2736 = vsel %vm2691, %v2733, %v2735
        %v2737 = vrot.slane %v2622, 7
        %v2738 = vrot.slane %v2623, 7
        %v2739 = vsel %vm2691, %v2737, %v2738
        %v2740 = vrot.slane %v2624, 7
        %v2741 = vsel %vm2691, %v2738, %v2740
        %v2742 = vrot.slane %v2625, 7
        %v2743 = vrot.slane %v2626, 7
        %v2744 = vsel %vm2691, %v2742, %v2743
        %v2745 = vrot.slane %v2627, 7
        %v2746 = vsel %vm2691, %v2743, %v2745
        %v2747 = vrot.slane %v2628, 7
        %v2748 = vrot.slane %v2629, 7
        %v2749 = vsel %vm2691, %v2747, %v2748
        %v2750 = vrot.slane %v2630, 7
        %v2751 = vsel %vm2691, %v2748, %v2750
        %v2752 = vrot.slane %v2631, 7
        %v2753 = vrot.slane %v2632, 7
        %v2754 = vsel %vm2691, %v2752, %v2753
        %v2755 = vrot.slane %v2633, 7
        %v2756 = vsel %vm2691, %v2753, %v2755
        %v2757 = vrot.slane %v2634, 7
        %v2758 = vrot.slane %v2635, 7
        %v2759 = vsel %vm2691, %v2757, %v2758
        %v2760 = vrot.slane %v2636, 7
        %v2761 = vsel %vm2691, %v2758, %v2760
        %v2762 = vrot.slane %v2637, 7
        %v2763 = vrot.slane %v2638, 7
        %v2764 = vsel %vm2691, %v2762, %v2763
        %v2765 = vrot.slane %v2639, 7
        %v2766 = vsel %vm2691, %v2763, %v2765
        %v2767 = vrot.slane %v2640, 7
        %v2768 = vrot.slane %v2641, 7
        %v2769 = vsel %vm2691, %v2767, %v2768
        %v2770 = vrot.slane %v2642, 7
        %v2771 = vsel %vm2691, %v2768, %v2770
        %v2772 = vld [vmem:[%s4] sm:$0xff]
        %v2773 = vld [vmem:[%s4 + $0x8] sm:$0xff]
        %v2774 = vld [vmem:[%s4 + $0x10] sm:$0xff]
        %v2775 = vld [vmem:[%s4 + $0x18] sm:$0xff]
        %v2776 = vld [vmem:[%s4 + $0x20] sm:$0xf]
        %vm2777 = vcmask 293888
        %v2778 = vsel %vm2777, %v2694, 0
        %v2780 = vsel %vm2777, %v2696, 0
        %v2782 = vsel %vm2777, %v2699, 0
        %v2784 = vsel %vm2777, %v2701, 0
        %v2786 = vsel %vm2777, %v2704, 0
        %v2788 = vsel %vm2777, %v2706, 0
        %v2790 = vsel %vm2777, %v2709, 0
        %v2792 = vsel %vm2777, %v2711, 0
        %v2794 = vsel %vm2777, %v2714, 0
        %v2796 = vsel %vm2777, %v2716, 0
        %v2798 = vsel %vm2777, %v2719, 0
        %v2800 = vsel %vm2777, %v2721, 0
        %v2802 = vsel %vm2777, %v2724, 0
        %v2804 = vsel %vm2777, %v2726, 0
        %v2806 = vsel %vm2777, %v2729, 0
        %v2808 = vsel %vm2777, %v2731, 0
        %v2810 = vsel %vm2777, %v2734, 0
        %v2812 = vsel %vm2777, %v2736, 0
        %v2814 = vsel %vm2777, %v2739, 0
        %v2816 = vsel %vm2777, %v2741, 0
        %v2818 = vsel %vm2777, %v2744, 0
        %v2820 = vsel %vm2777, %v2746, 0
        %v2822 = vsel %vm2777, %v2749, 0
        %v2824 = vsel %vm2777, %v2751, 0
        %v2826 = vsel %vm2777, %v2754, 0
        %v2828 = vsel %vm2777, %v2756, 0
        %v2830 = vsel %vm2777, %v2759, 0
        %v2832 = vsel %vm2777, %v2761, 0
        %v2834 = vsel %vm2777, %v2764, 0
        %v2836 = vsel %vm2777, %v2766, 0
        %v2838 = vsel %vm2777, %v2769, 0
        %v2840 = vsel %vm2777, %v2771, 0
        %vm2842 = vcmask 1043456
        %v2844 = vsel %vm2842, %v2776, 0
        %2846 = vmatpush.msra.mxu0 0.0
        %2847 = vmatpush.msra.mxu0 0.0
        %2848 = vmatpush.msra.mxu0 0.0
        %2849 = vmatpush.msra.mxu0 0.0
        %2850 = vmatpush.msra.mxu0 0.0
        %2851 = vmatpush.msra.mxu0 0.0
        %2852 = vmatpush.msra.mxu0 0.0
        %2853 = vmatpush.msra.mxu0 0.0
        %2854 = vmatpush.msra.mxu0 0.0
        %2855 = vmatpush.msra.mxu0 0.0
        %2856 = vmatpush.msra.mxu0 0.0
        %2857 = vmatpush.msra.mxu0 %v2844
        %2858 = vmatpush.msra.mxu0 %v2775
        %2859 = vmatpush.msra.mxu0 %v2774
        %2860 = vmatpush.msra.mxu0 %v2773
        %2861 = vmatpush.msra.mxu0 %v2772
        %2862 = vmatmul.f32.gmra.mxu0 %v2778
        %v2863 = vpop.f32.mrf.mxu0
        %v2864 = vadd.f32 0.0, %v2863
        %2865 = vmatmul.f32.gmra.mxu0 %v2780
        %v2866 = vpop.f32.mrf.mxu0
        %v2867 = vadd.f32 0.0, %v2866
        %2868 = vmatmul.f32.gmra.mxu0 %v2782
        %v2869 = vpop.f32.mrf.mxu0
        %v2870 = vadd.f32 0.0, %v2869
        %2871 = vmatmul.f32.gmra.mxu0 %v2784
        %v2872 = vpop.f32.mrf.mxu0
        %v2873 = vadd.f32 0.0, %v2872
        %2874 = vmatmul.f32.gmra.mxu0 %v2786
        %v2875 = vpop.f32.mrf.mxu0
        %v2876 = vadd.f32 0.0, %v2875
        %2877 = vmatmul.f32.gmra.mxu0 %v2788
        %v2878 = vpop.f32.mrf.mxu0
        %v2879 = vadd.f32 0.0, %v2878
        %2880 = vmatmul.f32.gmra.mxu0 %v2790
        %v2881 = vpop.f32.mrf.mxu0
        %v2882 = vadd.f32 0.0, %v2881
        %2883 = vmatmul.f32.gmra.mxu0 %v2792
        %v2884 = vpop.f32.mrf.mxu0
        %v2885 = vadd.f32 0.0, %v2884
        %2886 = vmatmul.f32.gmra.mxu0 %v2794
        %v2887 = vpop.f32.mrf.mxu0
        %v2888 = vadd.f32 0.0, %v2887
        %2889 = vmatmul.f32.gmra.mxu0 %v2796
        %v2890 = vpop.f32.mrf.mxu0
        %v2891 = vadd.f32 0.0, %v2890
        %2892 = vmatmul.f32.gmra.mxu0 %v2798
        %v2893 = vpop.f32.mrf.mxu0
        %v2894 = vadd.f32 0.0, %v2893
        %2895 = vmatmul.f32.gmra.mxu0 %v2800
        %v2896 = vpop.f32.mrf.mxu0
        %v2897 = vadd.f32 0.0, %v2896
        %2898 = vmatmul.f32.gmra.mxu0 %v2802
        %v2899 = vpop.f32.mrf.mxu0
        %v2900 = vadd.f32 0.0, %v2899
        %2901 = vmatmul.f32.gmra.mxu0 %v2804
        %v2902 = vpop.f32.mrf.mxu0
        %v2903 = vadd.f32 0.0, %v2902
        %2904 = vmatmul.f32.gmra.mxu0 %v2806
        %v2905 = vpop.f32.mrf.mxu0
        %v2906 = vadd.f32 0.0, %v2905
        %2907 = vmatmul.f32.gmra.mxu0 %v2808
        %v2908 = vpop.f32.mrf.mxu0
        %v2909 = vadd.f32 0.0, %v2908
        %2910 = vmatmul.f32.gmra.mxu0 %v2810
        %v2911 = vpop.f32.mrf.mxu0
        %v2912 = vadd.f32 0.0, %v2911
        %2913 = vmatmul.f32.gmra.mxu0 %v2812
        %v2914 = vpop.f32.mrf.mxu0
        %v2915 = vadd.f32 0.0, %v2914
        %2916 = vmatmul.f32.gmra.mxu0 %v2814
        %v2917 = vpop.f32.mrf.mxu0
        %v2918 = vadd.f32 0.0, %v2917
        %2919 = vmatmul.f32.gmra.mxu0 %v2816
        %v2920 = vpop.f32.mrf.mxu0
        %v2921 = vadd.f32 0.0, %v2920
        %2922 = vmatmul.f32.gmra.mxu0 %v2818
        %v2923 = vpop.f32.mrf.mxu0
        %v2924 = vadd.f32 0.0, %v2923
        %2925 = vmatmul.f32.gmra.mxu0 %v2820
        %v2926 = vpop.f32.mrf.mxu0
        %v2927 = vadd.f32 0.0, %v2926
        %2928 = vmatmul.f32.gmra.mxu0 %v2822
        %v2929 = vpop.f32.mrf.mxu0
        %v2930 = vadd.f32 0.0, %v2929
        %2931 = vmatmul.f32.gmra.mxu0 %v2824
        %v2932 = vpop.f32.mrf.mxu0
        %v2933 = vadd.f32 0.0, %v2932
        %2934 = vmatmul.f32.gmra.mxu0 %v2826
        %v2935 = vpop.f32.mrf.mxu0
        %v2936 = vadd.f32 0.0, %v2935
        %2937 = vmatmul.f32.gmra.mxu0 %v2828
        %v2938 = vpop.f32.mrf.mxu0
        %v2939 = vadd.f32 0.0, %v2938
        %2940 = vmatmul.f32.gmra.mxu0 %v2830
        %v2941 = vpop.f32.mrf.mxu0
        %v2942 = vadd.f32 0.0, %v2941
        %2943 = vmatmul.f32.gmra.mxu0 %v2832
        %v2944 = vpop.f32.mrf.mxu0
        %v2945 = vadd.f32 0.0, %v2944
        %2946 = vmatmul.f32.gmra.mxu0 %v2834
        %v2947 = vpop.f32.mrf.mxu0
        %v2948 = vadd.f32 0.0, %v2947
        %2949 = vmatmul.f32.gmra.mxu0 %v2836
        %v2950 = vpop.f32.mrf.mxu0
        %v2951 = vadd.f32 0.0, %v2950
        %2952 = vmatmul.f32.gmra.mxu0 %v2838
        %v2953 = vpop.f32.mrf.mxu0
        %v2954 = vadd.f32 0.0, %v2953
        %2955 = vmatmul.f32.gmra.mxu0 %v2840
        %v2956 = vpop.f32.mrf.mxu0
        %v2957 = vadd.f32 0.0, %v2956
        %2958 = vdwg.mxu0
        %v2959 = vld [vmem:[%s5] sm:$0x1]
        %v2961 = vperm.slane %v2959, 0
        %v2963 = vmul.f32 %v2864, %v2961
        %v2964 = vmul.f32 %v2867, %v2961
        %v2965 = vmul.f32 %v2870, %v2961
        %v2966 = vmul.f32 %v2873, %v2961
        %v2967 = vmul.f32 %v2876, %v2961
        %v2968 = vmul.f32 %v2879, %v2961
        %v2969 = vmul.f32 %v2882, %v2961
        %v2970 = vmul.f32 %v2885, %v2961
        %v2971 = vmul.f32 %v2888, %v2961
        %v2972 = vmul.f32 %v2891, %v2961
        %v2973 = vmul.f32 %v2894, %v2961
        %v2974 = vmul.f32 %v2897, %v2961
        %v2975 = vmul.f32 %v2900, %v2961
        %v2976 = vmul.f32 %v2903, %v2961
        %v2977 = vmul.f32 %v2906, %v2961
        %v2978 = vmul.f32 %v2909, %v2961
        %v2979 = vmul.f32 %v2912, %v2961
        %v2980 = vmul.f32 %v2915, %v2961
        %v2981 = vmul.f32 %v2918, %v2961
        %v2982 = vmul.f32 %v2921, %v2961
        %v2983 = vmul.f32 %v2924, %v2961
        %v2984 = vmul.f32 %v2927, %v2961
        %v2985 = vmul.f32 %v2930, %v2961
        %v2986 = vmul.f32 %v2933, %v2961
        %v2987 = vmul.f32 %v2936, %v2961
        %v2988 = vmul.f32 %v2939, %v2961
        %v2989 = vmul.f32 %v2942, %v2961
        %v2990 = vmul.f32 %v2945, %v2961
        %v2991 = vmul.f32 %v2948, %v2961
        %v2992 = vmul.f32 %v2951, %v2961
        %v2993 = vmul.f32 %v2954, %v2961
        %v2994 = vmul.f32 %v2957, %v2961
        %v2995 = vld [vmem:[%s6] sm:$0x1]
        %v2997 = vperm.slane %v2995, 0
        %v2999 = vadd.f32 %v2963, %v2997
        %v3000 = vadd.f32 %v2964, %v2997
        %v3001 = vadd.f32 %v2965, %v2997
        %v3002 = vadd.f32 %v2966, %v2997
        %v3003 = vadd.f32 %v2967, %v2997
        %v3004 = vadd.f32 %v2968, %v2997
        %v3005 = vadd.f32 %v2969, %v2997
        %v3006 = vadd.f32 %v2970, %v2997
        %v3007 = vadd.f32 %v2971, %v2997
        %v3008 = vadd.f32 %v2972, %v2997
        %v3009 = vadd.f32 %v2973, %v2997
        %v3010 = vadd.f32 %v2974, %v2997
        %v3011 = vadd.f32 %v2975, %v2997
        %v3012 = vadd.f32 %v2976, %v2997
        %v3013 = vadd.f32 %v2977, %v2997
        %v3014 = vadd.f32 %v2978, %v2997
        %v3015 = vadd.f32 %v2979, %v2997
        %v3016 = vadd.f32 %v2980, %v2997
        %v3017 = vadd.f32 %v2981, %v2997
        %v3018 = vadd.f32 %v2982, %v2997
        %v3019 = vadd.f32 %v2983, %v2997
        %v3020 = vadd.f32 %v2984, %v2997
        %v3021 = vadd.f32 %v2985, %v2997
        %v3022 = vadd.f32 %v2986, %v2997
        %v3023 = vadd.f32 %v2987, %v2997
        %v3024 = vadd.f32 %v2988, %v2997
        %v3025 = vadd.f32 %v2989, %v2997
        %v3026 = vadd.f32 %v2990, %v2997
        %v3027 = vadd.f32 %v2991, %v2997
        %v3028 = vadd.f32 %v2992, %v2997
        %v3029 = vadd.f32 %v2993, %v2997
        %v3030 = vadd.f32 %v2994, %v2997
        %v3031 = vmax.f32 %v2999, 0.0
        %v3032 = vmax.f32 %v3000, 0.0
        %v3033 = vmax.f32 %v3001, 0.0
        %v3034 = vmax.f32 %v3002, 0.0
        %v3035 = vmax.f32 %v3003, 0.0
        %v3036 = vmax.f32 %v3004, 0.0
        %v3037 = vmax.f32 %v3005, 0.0
        %v3038 = vmax.f32 %v3006, 0.0
        %v3039 = vmax.f32 %v3007, 0.0
        %v3040 = vmax.f32 %v3008, 0.0
        %v3041 = vmax.f32 %v3009, 0.0
        %v3042 = vmax.f32 %v3010, 0.0
        %v3043 = vmax.f32 %v3011, 0.0
        %v3044 = vmax.f32 %v3012, 0.0
        %v3045 = vmax.f32 %v3013, 0.0
        %v3046 = vmax.f32 %v3014, 0.0
        %v3047 = vmax.f32 %v3015, 0.0
        %v3048 = vmax.f32 %v3016, 0.0
        %v3049 = vmax.f32 %v3017, 0.0
        %v3050 = vmax.f32 %v3018, 0.0
        %v3051 = vmax.f32 %v3019, 0.0
        %v3052 = vmax.f32 %v3020, 0.0
        %v3053 = vmax.f32 %v3021, 0.0
        %v3054 = vmax.f32 %v3022, 0.0
        %v3055 = vmax.f32 %v3023, 0.0
        %v3056 = vmax.f32 %v3024, 0.0
        %v3057 = vmax.f32 %v3025, 0.0
        %v3058 = vmax.f32 %v3026, 0.0
        %v3059 = vmax.f32 %v3027, 0.0
        %v3060 = vmax.f32 %v3028, 0.0
        %v3061 = vmax.f32 %v3029, 0.0
        %v3062 = vmax.f32 %v3030, 0.0
        %v3063 = vld [vmem:[%s7] sm:$0xf]
        %v3065 = vsel %vm705, %v3031, 0
        %v3068 = vsel %vm705, %v3032, 0
        %v3071 = vsel %vm705, %v3033, 0
        %v3074 = vsel %vm705, %v3034, 0
        %v3077 = vsel %vm705, %v3035, 0
        %v3080 = vsel %vm705, %v3036, 0
        %v3083 = vsel %vm705, %v3037, 0
        %v3086 = vsel %vm705, %v3038, 0
        %v3089 = vsel %vm705, %v3039, 0
        %v3092 = vsel %vm705, %v3040, 0
        %v3095 = vsel %vm705, %v3041, 0
        %v3098 = vsel %vm705, %v3042, 0
        %v3101 = vsel %vm705, %v3043, 0
        %v3104 = vsel %vm705, %v3044, 0
        %v3107 = vsel %vm705, %v3045, 0
        %v3110 = vsel %vm705, %v3046, 0
        %v3113 = vsel %vm705, %v3047, 0
        %v3116 = vsel %vm705, %v3048, 0
        %v3119 = vsel %vm705, %v3049, 0
        %v3122 = vsel %vm705, %v3050, 0
        %v3125 = vsel %vm705, %v3051, 0
        %v3128 = vsel %vm705, %v3052, 0
        %v3131 = vsel %vm705, %v3053, 0
        %v3134 = vsel %vm705, %v3054, 0
        %v3137 = vsel %vm705, %v3055, 0
        %v3140 = vsel %vm705, %v3056, 0
        %v3143 = vsel %vm705, %v3057, 0
        %v3146 = vsel %vm705, %v3058, 0
        %v3149 = vsel %vm705, %v3059, 0
        %v3152 = vsel %vm705, %v3060, 0
        %v3155 = vsel %vm705, %v3061, 0
        %v3158 = vsel %vm705, %v3062, 0
        %v3161 = vsel %vm2842, %v3063, 0
        %3163 = vmatpush.msra.mxu0 0.0
        %3164 = vmatpush.msra.mxu0 0.0
        %3165 = vmatpush.msra.mxu0 0.0
        %3166 = vmatpush.msra.mxu0 0.0
        %3167 = vmatpush.msra.mxu0 0.0
        %3168 = vmatpush.msra.mxu0 0.0
        %3169 = vmatpush.msra.mxu0 0.0
        %3170 = vmatpush.msra.mxu0 0.0
        %3171 = vmatpush.msra.mxu0 0.0
        %3172 = vmatpush.msra.mxu0 0.0
        %3173 = vmatpush.msra.mxu0 0.0
        %3174 = vmatpush.msra.mxu0 0.0
        %3175 = vmatpush.msra.mxu0 0.0
        %3176 = vmatpush.msra.mxu0 0.0
        %3177 = vmatpush.msra.mxu0 0.0
        %3178 = vmatpush.msra.mxu0 %v3161
        %3179 = vmatmul.f32.gmra.mxu0 %v3065
        %v3180 = vpop.f32.mrf.mxu0
        %v3181 = vadd.f32 0.0, %v3180
        %3182 = vmatmul.f32.gmra.mxu0 %v3068
        %v3183 = vpop.f32.mrf.mxu0
        %v3184 = vadd.f32 0.0, %v3183
        %3185 = vmatmul.f32.gmra.mxu0 %v3071
        %v3186 = vpop.f32.mrf.mxu0
        %v3187 = vadd.f32 0.0, %v3186
        %3188 = vmatmul.f32.gmra.mxu0 %v3074
        %v3189 = vpop.f32.mrf.mxu0
        %v3190 = vadd.f32 0.0, %v3189
        %3191 = vmatmul.f32.gmra.mxu0 %v3077
        %v3192 = vpop.f32.mrf.mxu0
        %v3193 = vadd.f32 0.0, %v3192
        %3194 = vmatmul.f32.gmra.mxu0 %v3080
        %v3195 = vpop.f32.mrf.mxu0
        %v3196 = vadd.f32 0.0, %v3195
        %3197 = vmatmul.f32.gmra.mxu0 %v3083
        %v3198 = vpop.f32.mrf.mxu0
        %v3199 = vadd.f32 0.0, %v3198
        %3200 = vmatmul.f32.gmra.mxu0 %v3086
        %v3201 = vpop.f32.mrf.mxu0
        %v3202 = vadd.f32 0.0, %v3201
        %3203 = vmatmul.f32.gmra.mxu0 %v3089
        %v3204 = vpop.f32.mrf.mxu0
        %v3205 = vadd.f32 0.0, %v3204
        %3206 = vmatmul.f32.gmra.mxu0 %v3092
        %v3207 = vpop.f32.mrf.mxu0
        %v3208 = vadd.f32 0.0, %v3207
        %3209 = vmatmul.f32.gmra.mxu0 %v3095
        %v3210 = vpop.f32.mrf.mxu0
        %v3211 = vadd.f32 0.0, %v3210
        %3212 = vmatmul.f32.gmra.mxu0 %v3098
        %v3213 = vpop.f32.mrf.mxu0
        %v3214 = vadd.f32 0.0, %v3213
        %3215 = vmatmul.f32.gmra.mxu0 %v3101
        %v3216 = vpop.f32.mrf.mxu0
        %v3217 = vadd.f32 0.0, %v3216
        %3218 = vmatmul.f32.gmra.mxu0 %v3104
        %v3219 = vpop.f32.mrf.mxu0
        %v3220 = vadd.f32 0.0, %v3219
        %3221 = vmatmul.f32.gmra.mxu0 %v3107
        %v3222 = vpop.f32.mrf.mxu0
        %v3223 = vadd.f32 0.0, %v3222
        %3224 = vmatmul.f32.gmra.mxu0 %v3110
        %v3225 = vpop.f32.mrf.mxu0
        %v3226 = vadd.f32 0.0, %v3225
        %3227 = vmatmul.f32.gmra.mxu0 %v3113
        %v3228 = vpop.f32.mrf.mxu0
        %v3229 = vadd.f32 0.0, %v3228
        %3230 = vmatmul.f32.gmra.mxu0 %v3116
        %v3231 = vpop.f32.mrf.mxu0
        %v3232 = vadd.f32 0.0, %v3231
        %3233 = vmatmul.f32.gmra.mxu0 %v3119
        %v3234 = vpop.f32.mrf.mxu0
        %v3235 = vadd.f32 0.0, %v3234
        %3236 = vmatmul.f32.gmra.mxu0 %v3122
        %v3237 = vpop.f32.mrf.mxu0
        %v3238 = vadd.f32 0.0, %v3237
        %3239 = vmatmul.f32.gmra.mxu0 %v3125
        %v3240 = vpop.f32.mrf.mxu0
        %v3241 = vadd.f32 0.0, %v3240
        %3242 = vmatmul.f32.gmra.mxu0 %v3128
        %v3243 = vpop.f32.mrf.mxu0
        %v3244 = vadd.f32 0.0, %v3243
        %3245 = vmatmul.f32.gmra.mxu0 %v3131
        %v3246 = vpop.f32.mrf.mxu0
        %v3247 = vadd.f32 0.0, %v3246
        %3248 = vmatmul.f32.gmra.mxu0 %v3134
        %v3249 = vpop.f32.mrf.mxu0
        %v3250 = vadd.f32 0.0, %v3249
        %3251 = vmatmul.f32.gmra.mxu0 %v3137
        %v3252 = vpop.f32.mrf.mxu0
        %v3253 = vadd.f32 0.0, %v3252
        %3254 = vmatmul.f32.gmra.mxu0 %v3140
        %v3255 = vpop.f32.mrf.mxu0
        %v3256 = vadd.f32 0.0, %v3255
        %3257 = vmatmul.f32.gmra.mxu0 %v3143
        %v3258 = vpop.f32.mrf.mxu0
        %v3259 = vadd.f32 0.0, %v3258
        %3260 = vmatmul.f32.gmra.mxu0 %v3146
        %v3261 = vpop.f32.mrf.mxu0
        %v3262 = vadd.f32 0.0, %v3261
        %3263 = vmatmul.f32.gmra.mxu0 %v3149
        %v3264 = vpop.f32.mrf.mxu0
        %v3265 = vadd.f32 0.0, %v3264
        %3266 = vmatmul.f32.gmra.mxu0 %v3152
        %v3267 = vpop.f32.mrf.mxu0
        %v3268 = vadd.f32 0.0, %v3267
        %3269 = vmatmul.f32.gmra.mxu0 %v3155
        %v3270 = vpop.f32.mrf.mxu0
        %v3271 = vadd.f32 0.0, %v3270
        %3272 = vmatmul.f32.gmra.mxu0 %v3158
        %v3273 = vpop.f32.mrf.mxu0
        %v3274 = vadd.f32 0.0, %v3273
        %3275 = vdwg.mxu0
        %v3276 = vld [vmem:[%s8] sm:$0x1]
        %v3278 = vperm.slane %v3276, 0
        %v3280 = vmul.f32 %v3181, %v3278
        %v3281 = vmul.f32 %v3184, %v3278
        %v3282 = vmul.f32 %v3187, %v3278
        %v3283 = vmul.f32 %v3190, %v3278
        %v3284 = vmul.f32 %v3193, %v3278
        %v3285 = vmul.f32 %v3196, %v3278
        %v3286 = vmul.f32 %v3199, %v3278
        %v3287 = vmul.f32 %v3202, %v3278
        %v3288 = vmul.f32 %v3205, %v3278
        %v3289 = vmul.f32 %v3208, %v3278
        %v3290 = vmul.f32 %v3211, %v3278
        %v3291 = vmul.f32 %v3214, %v3278
        %v3292 = vmul.f32 %v3217, %v3278
        %v3293 = vmul.f32 %v3220, %v3278
        %v3294 = vmul.f32 %v3223, %v3278
        %v3295 = vmul.f32 %v3226, %v3278
        %v3296 = vmul.f32 %v3229, %v3278
        %v3297 = vmul.f32 %v3232, %v3278
        %v3298 = vmul.f32 %v3235, %v3278
        %v3299 = vmul.f32 %v3238, %v3278
        %v3300 = vmul.f32 %v3241, %v3278
        %v3301 = vmul.f32 %v3244, %v3278
        %v3302 = vmul.f32 %v3247, %v3278
        %v3303 = vmul.f32 %v3250, %v3278
        %v3304 = vmul.f32 %v3253, %v3278
        %v3305 = vmul.f32 %v3256, %v3278
        %v3306 = vmul.f32 %v3259, %v3278
        %v3307 = vmul.f32 %v3262, %v3278
        %v3308 = vmul.f32 %v3265, %v3278
        %v3309 = vmul.f32 %v3268, %v3278
        %v3310 = vmul.f32 %v3271, %v3278
        %v3311 = vmul.f32 %v3274, %v3278
        %v3312 = vld [vmem:[%s9] sm:$0x1]
        %v3314 = vperm.slane %v3312, 0
        %v3316 = vadd.f32 %v3280, %v3314
        %v3317 = vadd.f32 %v3281, %v3314
        %v3318 = vadd.f32 %v3282, %v3314
        %v3319 = vadd.f32 %v3283, %v3314
        %v3320 = vadd.f32 %v3284, %v3314
        %v3321 = vadd.f32 %v3285, %v3314
        %v3322 = vadd.f32 %v3286, %v3314
        %v3323 = vadd.f32 %v3287, %v3314
        %v3324 = vadd.f32 %v3288, %v3314
        %v3325 = vadd.f32 %v3289, %v3314
        %v3326 = vadd.f32 %v3290, %v3314
        %v3327 = vadd.f32 %v3291, %v3314
        %v3328 = vadd.f32 %v3292, %v3314
        %v3329 = vadd.f32 %v3293, %v3314
        %v3330 = vadd.f32 %v3294, %v3314
        %v3331 = vadd.f32 %v3295, %v3314
        %v3332 = vadd.f32 %v3296, %v3314
        %v3333 = vadd.f32 %v3297, %v3314
        %v3334 = vadd.f32 %v3298, %v3314
        %v3335 = vadd.f32 %v3299, %v3314
        %v3336 = vadd.f32 %v3300, %v3314
        %v3337 = vadd.f32 %v3301, %v3314
        %v3338 = vadd.f32 %v3302, %v3314
        %v3339 = vadd.f32 %v3303, %v3314
        %v3340 = vadd.f32 %v3304, %v3314
        %v3341 = vadd.f32 %v3305, %v3314
        %v3342 = vadd.f32 %v3306, %v3314
        %v3343 = vadd.f32 %v3307, %v3314
        %v3344 = vadd.f32 %v3308, %v3314
        %v3345 = vadd.f32 %v3309, %v3314
        %v3346 = vadd.f32 %v3310, %v3314
        %v3347 = vadd.f32 %v3311, %v3314
        %3348 = vst.msk [vmem:[%s352] sm:$0xff] %vm2398, %v3316
        %3349 = vst.msk [vmem:[%s352 + $0x8] sm:$0xff] %vm2398, %v3317
        %3350 = vst.msk [vmem:[%s352 + $0x10] sm:$0xff] %vm2398, %v3318
        %3351 = vst.msk [vmem:[%s352 + $0x18] sm:$0xff] %vm2398, %v3319
        %3352 = vst.msk [vmem:[%s352 + $0x20] sm:$0xff] %vm2398, %v3320
        %3353 = vst.msk [vmem:[%s352 + $0x28] sm:$0xff] %vm2398, %v3321
        %3354 = vst.msk [vmem:[%s352 + $0x30] sm:$0xff] %vm2398, %v3322
        %3355 = vst.msk [vmem:[%s352 + $0x38] sm:$0xff] %vm2398, %v3323
        %3356 = vst.msk [vmem:[%s352 + $0x40] sm:$0xff] %vm2398, %v3324
        %3357 = vst.msk [vmem:[%s352 + $0x48] sm:$0xff] %vm2398, %v3325
        %3358 = vst.msk [vmem:[%s352 + $0x50] sm:$0xff] %vm2398, %v3326
        %3359 = vst.msk [vmem:[%s352 + $0x58] sm:$0xff] %vm2398, %v3327
        %3360 = vst.msk [vmem:[%s352 + $0x60] sm:$0xff] %vm2398, %v3328
        %3361 = vst.msk [vmem:[%s352 + $0x68] sm:$0xff] %vm2398, %v3329
        %3362 = vst.msk [vmem:[%s352 + $0x70] sm:$0xff] %vm2398, %v3330
        %3363 = vst.msk [vmem:[%s352 + $0x78] sm:$0xff] %vm2398, %v3331
        %3364 = vst.msk [vmem:[%s352 + $0x80] sm:$0xff] %vm2398, %v3332
        %3365 = vst.msk [vmem:[%s352 + $0x88] sm:$0xff] %vm2398, %v3333
        %3366 = vst.msk [vmem:[%s352 + $0x90] sm:$0xff] %vm2398, %v3334
        %3367 = vst.msk [vmem:[%s352 + $0x98] sm:$0xff] %vm2398, %v3335
        %3368 = vst.msk [vmem:[%s352 + $0xa0] sm:$0xff] %vm2398, %v3336
        %3369 = vst.msk [vmem:[%s352 + $0xa8] sm:$0xff] %vm2398, %v3337
        %3370 = vst.msk [vmem:[%s352 + $0xb0] sm:$0xff] %vm2398, %v3338
        %3371 = vst.msk [vmem:[%s352 + $0xb8] sm:$0xff] %vm2398, %v3339
        %3372 = vst.msk [vmem:[%s352 + $0xc0] sm:$0xff] %vm2398, %v3340
        %3373 = vst.msk [vmem:[%s352 + $0xc8] sm:$0xff] %vm2398, %v3341
        %3374 = vst.msk [vmem:[%s352 + $0xd0] sm:$0xff] %vm2398, %v3342
        %3375 = vst.msk [vmem:[%s352 + $0xd8] sm:$0xff] %vm2398, %v3343
        %3376 = vst.msk [vmem:[%s352 + $0xe0] sm:$0xff] %vm2398, %v3344
        %3377 = vst.msk [vmem:[%s352 + $0xe8] sm:$0xff] %vm2398, %v3345
        %3378 = vst.msk [vmem:[%s352 + $0xf0] sm:$0xff] %vm2398, %v3346
        %3379 = vst.msk [vmem:[%s352 + $0xf8] sm:$0xff] %vm2398, %v3347
        %s3380 = sand.u32 %s247, 1
        %s3381 = scalar_lea.sflag [#allocation4], %s3380
        %s3382 = sand.u32 %s247, 1
        %s3383 = smul.addr %s3382, 256
        %s3384 = scalar_lea.vmem [#allocation3], %s3383
        // Predicated region
        $region61: #{tpu_custom_call.1} parent=59 // pred_check
          %p3385 = pneg %p257
        $region62: #{tpu_custom_call.1} parent=59 // pred_check_branch
          %3387 = sbr.rel (%p3385) target = $region64
        $region63: #{tpu_custom_call.1} parent=59 // pred_region
          %3389 = vsyncadd %s3381, 0
          %s3390 = smul.addr %s24, 32
          %s3391 = smul.addr %s3390, 8
          %s3392 = scalar_lea.hbm %s10, %s3391
          %s3393 = sshll.u32 %s3384, 4
          %s3394 = int_to_ptr.vmem [resolvable:$true] %s3393
          %s3395 = sshll.u32 %s3392, 4
          %s3396 = int_to_ptr.hbm [resolvable:$true] %s3395
          %3401 = dma.vmem_to_hbm [thread:$0]  %s3394, 4096, %s3396, %s3381, 128, 128, 8
        $region64: #{tpu_custom_call.1} parent=59 // pred_fallthru
          _
      $region60: #{tpu_custom_call.1} parent=5 // pred_fallthru
        _
      %p3402 = scmp.le.s32.totalorder 2, %s19
      // Predicated region
      $region65: #{tpu_custom_call.1} parent=5 // pred_check
        %p3403 = pneg %p3402
      $region66: #{tpu_custom_call.1} parent=5 // pred_check_branch
        %3405 = sbr.rel (%p3403) target = $region68
      $region67: #{tpu_custom_call.1} parent=5 // pred_region
        %s3406 = ssub.s32 %s19, 2
        // Predicated region
        $region69: #{tpu_custom_call.1} parent=67 // pred_check
          %p3407 = pneg %p263
        $region70: #{tpu_custom_call.1} parent=67 // pred_check_branch
          %3409 = sbr.rel (%p3407) target = $region72
        $region71: #{tpu_custom_call.1} parent=67 // pred_region
          %s3410 = sand.u32 %s248, 1
          %s3411 = scalar_lea.sflag [#allocation4], %s3410
          %s3412 = sand.u32 %s248, 1
          %s3413 = smul.addr %s3412, 256
          %s3414 = scalar_lea.vmem [#allocation3], %s3413
          %3416 = dma.done %s3411, 4096
        $region72: #{tpu_custom_call.1} parent=67 // pred_fallthru
          _
      $region68: #{tpu_custom_call.1} parent=5 // pred_fallthru
        _
    $region6: #{tpu_custom_call.1} parent=1 // loop_footer
      %s23 = sadd.s32 1, %s19
    $region7: #{tpu_custom_call.1} parent=1 // loop_footer_branch
      %18 = sbr.rel target = $region3
    $region8: #{tpu_custom_call.1} parent=1 // loop_exit
      _
    %3417 = vsyncpa [#allocation4], 1
    %s3418 = scalar_lea.sflag [#allocation4], 1
    %3419 = vsyncpa %s3418, 1

</llo_original>
